<compile_context>
chip_gen: v5e
topology: v5e:2x2
jax: 0.10.0
libtpu: 0.0.40
codegen_flags: <defaults>
</compile_context>

<pallas_src>
import jax
import jax.numpy as jnp
from jax import lax
from jax.experimental import pallas as pl
from jax.experimental.pallas import tpu as pltpu


# ----------------------------------------------------------------------------
# Fused Pallas kernel: one batch element per grid step.
# ----------------------------------------------------------------------------
def _cca_kernel(x_ref, wqkv_ref, bqkv_ref, wg_ref, bg_ref, o_ref):
    # x_ref / o_ref : (C, HW)       channel-major, lane-dense (HW on lane axis)
    # wqkv_ref      : (C, 2*Cq + C) pre-transposed, concatenated [Wq | Wk | Wv]
    # bqkv_ref      : (1, 2*Cq + C) concatenated [bq | bk | bv]
    # wg_ref        : (C, C)        gamma conv weight, native (C_out, C_in)
    # bg_ref        : (C, 1)        gamma conv bias (channel-major column)
    f32 = jnp.float32
    C, HW = x_ref.shape
    Cq = (bqkv_ref.shape[-1] - C) // 2

    x_ch = x_ref[...]                                   # (C, HW) lane-dense load
    x_tok = x_ch.T                                      # (HW, C) token-major

    # Fused Q/K/V 1x1-conv projection: one MXU matmul + one broadcast bias add.
    qkv = jnp.dot(x_tok, wqkv_ref[...],
                  preferred_element_type=f32) + bqkv_ref[...]       # (HW, 2Cq+C)
    q = qkv[:, :Cq]                                     # (HW, Cq)
    k = qkv[:, Cq:2 * Cq]                               # (HW, Cq)
    v = qkv[:, 2 * Cq:]                                 # (HW, C)

    # energy[i, j] = q[i, :] . k[j, :]  -> (HW, HW)  (transposed-RHS MXU matmul)
    energy = lax.dot_general(q, k, (((1,), (1,)), ((), ())),
                             preferred_element_type=f32)

    # Numerically-stable softmax over the last axis (matches torch.Softmax(-1)).
    m = jnp.max(energy, axis=-1, keepdims=True)
    p = jnp.exp(energy - m)
    l = jnp.sum(p, axis=-1, keepdims=True)
    attn = p * pl.reciprocal(l, approx=True)            # EUP recip, VPU multiply

    # ctx[i, c] = sum_j attn[i, j] * v[j, c]  -> (HW, C)
    ctx = jnp.dot(attn, v, preferred_element_type=f32)

    # gamma 1x1 conv, channel-major: out_ch[c, i] = sum_d wg[c, d] * ctx[i, d]
    out_ch = lax.dot_general(wg_ref[...], ctx, (((1,), (1,)), ((), ())),
                             preferred_element_type=f32)             # (C, HW)

    # residual + bias, lane-dense store (no output transpose needed)
    o_ref[...] = (x_ch + out_ch + bg_ref[...]).astype(o_ref.dtype)


# ----------------------------------------------------------------------------
# Wrapper
# ----------------------------------------------------------------------------
def criss_cross_attention(x, params):
    """x: (B, C, H, W) NCHW; params: conv-style weights (C_out, C_in) + biases."""
    B, C, H, W = x.shape
    HW = H * W
    Cq = params["wq"].shape[0]
    F = 2 * Cq + C

    x_flat = x.reshape(B, C, HW)                          # NCHW -> (B, C, HW)

    # Host-side weight packing: one fused QKV matrix, gamma weight kept native.
    w_qkv = jnp.concatenate(
        [params["wq"].T, params["wk"].T, params["wv"].T], axis=1)    # (C, F)
    b_qkv = jnp.concatenate(
        [params["bq"], params["bk"], params["bv"]]).reshape(1, F)    # (1, F)
    wg = params["wg"]                                     # (C, C) native layout
    bg = params["bg"].reshape(C, 1)                       # (C, 1)

    def rep(shape):
        return pl.BlockSpec(shape, lambda b: (0,) * len(shape))

    out = pl.pallas_call(
        _cca_kernel,
        out_shape=jax.ShapeDtypeStruct((B, C, HW), x.dtype),
        grid=(B,),
        in_specs=[
            pl.BlockSpec((None, C, HW), lambda b: (b, 0, 0)),   # x (one batch elem)
            rep((C, F)), rep((1, F)),                           # fused QKV weight/bias
            rep((C, C)), rep((C, 1)),                           # gamma weight/bias
        ],
        out_specs=pl.BlockSpec((None, C, HW), lambda b: (b, 0, 0)),
        compiler_params=pltpu.CompilerParams(
            dimension_semantics=("parallel",)),
    )(x_flat, w_qkv, b_qkv, wg, bg)

    return out.reshape(B, C, H, W)


# ----------------------------------------------------------------------------
# Pure-JAX reference (mirrors the PyTorch forward) and deterministic params
# ----------------------------------------------------------------------------
def _conv1x1_ref(x, w, b):
    return jnp.einsum("oc,bchw->bohw", w, x, precision="highest") \
        + b[None, :, None, None]


def cca_reference(x, p):
    B, C, H, W = x.shape
    HW = H * W
    q = _conv1x1_ref(x, p["wq"], p["bq"]).reshape(B, -1, HW).transpose(0, 2, 1)
    k = _conv1x1_ref(x, p["wk"], p["bk"]).reshape(B, -1, HW)
    v = _conv1x1_ref(x, p["wv"], p["bv"]).reshape(B, -1, HW)
    energy = jnp.einsum("bic,bcj->bij", q, k, precision="highest")
    attn = jax.nn.softmax(energy, axis=-1)
    out = jnp.einsum("bcj,bij->bci", v, attn, precision="highest")
    out = _conv1x1_ref(out.reshape(B, C, H, W), p["wg"], p["bg"])
    return x + out


def make_params(key, in_channels):
    cq = in_channels // 8
    ks = jax.random.split(key, 8)

    def conv(kw, kb, cout, cin):
        w = jax.random.normal(kw, (cout, cin), jnp.float32) / jnp.sqrt(cin)
        b = 0.1 * jax.random.normal(kb, (cout,), jnp.float32)
        return w, b

    wq, bq = conv(ks[0], ks[1], cq, in_channels)
    wk, bk = conv(ks[2], ks[3], cq, in_channels)
    wv, bv = conv(ks[4], ks[5], in_channels, in_channels)
    wg, bg = conv(ks[6], ks[7], in_channels, in_channels)
    return dict(wq=wq, bq=bq, wk=wk, bk=bk, wv=wv, bv=bv, wg=wg, bg=bg)


# ----------------------------------------------------------------------------
if __name__ == "__main__":
    key = jax.random.PRNGKey(0)
    kx, kp = jax.random.split(key)

    # in_channels must be a multiple of 8 (query/key have C//8 channels): C=32, 16x16.
    B, C, H, W = 2, 32, 16, 16
    x = jax.random.normal(kx, (B, C, H, W), jnp.float32)
    params = make_params(kp, C)

    out = jax.block_until_ready(criss_cross_attention(x, params))

    assert out.shape == (B, C, H, W)
    assert bool(jnp.all(jnp.isfinite(out)))

    ref = jax.block_until_ready(cca_reference(x, params))
    max_err = float(jnp.max(jnp.abs(out - ref)))
    assert max_err < 5e-2, f"max abs error vs reference: {max_err}"

    print("KERNEL_OK")
</pallas_src>

<mosaic_0001>
module attributes {stable_mosaic.version = 11 : i64} {
  func.func @_cca_kernel(%arg0: i32, %arg1: memref<1x32x256xf32, #tpu.memory_space<vmem>>, %arg2: memref<32x40xf32, #tpu.memory_space<vmem>>, %arg3: memref<1x40xf32, #tpu.memory_space<vmem>>, %arg4: memref<32x32xf32, #tpu.memory_space<vmem>>, %arg5: memref<32x1xf32, #tpu.memory_space<vmem>>, %arg6: memref<1x32x256xf32, #tpu.memory_space<vmem>>) attributes {dimension_semantics = [#tpu.dimension_semantics<parallel>], iteration_bounds = array<i64: 2>, scalar_prefetch = 0 : i64, scratch_operands = 0 : i64, tpu.core_type = #tpu.core_type<tc>, window_params = [{transform_indices = @transform_0, window_bounds = array<i64: 1, 32, 256>}, {pipeline_mode = #tpu.pipeline_mode<synchronous>, transform_indices = @transform_1, window_bounds = array<i64: 32, 40>}, {pipeline_mode = #tpu.pipeline_mode<synchronous>, transform_indices = @transform_2, window_bounds = array<i64: 1, 40>}, {pipeline_mode = #tpu.pipeline_mode<synchronous>, transform_indices = @transform_3, window_bounds = array<i64: 32, 32>}, {pipeline_mode = #tpu.pipeline_mode<synchronous>, transform_indices = @transform_4, window_bounds = array<i64: 32, 1>}, {transform_indices = @transform_5, window_bounds = array<i64: 1, 32, 256>}]} {
    %c0 = arith.constant 0 : index
    %c0_0 = arith.constant 0 : index
    %c0_1 = arith.constant 0 : index
    %0 = vector.load %arg1[%c0, %c0_0, %c0_1] : memref<1x32x256xf32, #tpu.memory_space<vmem>>, vector<1x32x256xf32>
    %1 = vector.shape_cast %0 : vector<1x32x256xf32> to vector<32x256xf32>
    %2 = tpu.transpose %1, [1, 0] : vector<32x256xf32> -> vector<256x32xf32>
    %c0_2 = arith.constant 0 : index
    %c0_3 = arith.constant 0 : index
    %3 = vector.load %arg2[%c0_2, %c0_3] : memref<32x40xf32, #tpu.memory_space<vmem>>, vector<32x40xf32>
    %cst = arith.constant dense<0.000000e+00> : vector<256x40xf32>
    %4 = tpu.matmul %2, %3, %cst {dimension_numbers = #tpu.dot_dimension_numbers<[1], [0], [0], [1], [0, 0, 1, 1], [], []>} : vector<256x32xf32>, vector<32x40xf32>, vector<256x40xf32> -> vector<256x40xf32>
    %c0_4 = arith.constant 0 : index
    %c0_5 = arith.constant 0 : index
    %5 = vector.load %arg3[%c0_4, %c0_5] : memref<1x40xf32, #tpu.memory_space<vmem>>, vector<1x40xf32>
    %6 = vector.broadcast %5 : vector<1x40xf32> to vector<256x40xf32>
    %7 = arith.addf %4, %6 : vector<256x40xf32>
    %8 = vector.extract_strided_slice %7 {offsets = [0, 0], sizes = [256, 4], strides = [1, 1]} : vector<256x40xf32> to vector<256x4xf32>
    %9 = vector.extract_strided_slice %7 {offsets = [0, 4], sizes = [256, 4], strides = [1, 1]} : vector<256x40xf32> to vector<256x4xf32>
    %10 = vector.extract_strided_slice %7 {offsets = [0, 8], sizes = [256, 32], strides = [1, 1]} : vector<256x40xf32> to vector<256x32xf32>
    %cst_6 = arith.constant dense<0.000000e+00> : vector<256x256xf32>
    %11 = tpu.matmul %8, %9, %cst_6 {dimension_numbers = #tpu.dot_dimension_numbers<[1], [1], [0], [0], [0, 0, 1, 0], [], []>} : vector<256x4xf32>, vector<256x4xf32>, vector<256x256xf32> -> vector<256x256xf32>
    %cst_7 = arith.constant dense<0xFF800000> : vector<256xf32>
    %12 = vector.multi_reduction <maximumf>, %11, %cst_7 [1] : vector<256x256xf32> to vector<256xf32>
    %13 = vector.shape_cast %12 : vector<256xf32> to vector<256x1xf32>
    %14 = vector.broadcast %13 : vector<256x1xf32> to vector<256x256xf32>
    %15 = arith.subf %11, %14 : vector<256x256xf32>
    %16 = math.exp %15 : vector<256x256xf32>
    %cst_8 = arith.constant dense<0.000000e+00> : vector<256xf32>
    %17 = vector.multi_reduction <add>, %16, %cst_8 [1] : vector<256x256xf32> to vector<256xf32>
    %18 = vector.shape_cast %17 : vector<256xf32> to vector<256x1xf32>
    %19 = tpu.reciprocal %18 {approx = true} : vector<256x1xf32> -> vector<256x1xf32>
    %20 = vector.broadcast %19 : vector<256x1xf32> to vector<256x256xf32>
    %21 = arith.mulf %16, %20 : vector<256x256xf32>
    %cst_9 = arith.constant dense<0.000000e+00> : vector<256x32xf32>
    %22 = tpu.matmul %21, %10, %cst_9 {dimension_numbers = #tpu.dot_dimension_numbers<[1], [0], [0], [1], [0, 0, 1, 1], [], []>} : vector<256x256xf32>, vector<256x32xf32>, vector<256x32xf32> -> vector<256x32xf32>
    %c0_10 = arith.constant 0 : index
    %c0_11 = arith.constant 0 : index
    %23 = vector.load %arg4[%c0_10, %c0_11] : memref<32x32xf32, #tpu.memory_space<vmem>>, vector<32x32xf32>
    %cst_12 = arith.constant dense<0.000000e+00> : vector<32x256xf32>
    %24 = tpu.matmul %23, %22, %cst_12 {dimension_numbers = #tpu.dot_dimension_numbers<[1], [1], [0], [0], [0, 0, 1, 0], [], []>} : vector<32x32xf32>, vector<256x32xf32>, vector<32x256xf32> -> vector<32x256xf32>
    %25 = arith.addf %1, %24 : vector<32x256xf32>
    %c0_13 = arith.constant 0 : index
    %c0_14 = arith.constant 0 : index
    %26 = vector.load %arg5[%c0_13, %c0_14] : memref<32x1xf32, #tpu.memory_space<vmem>>, vector<32x1xf32>
    %27 = vector.broadcast %26 : vector<32x1xf32> to vector<32x256xf32>
    %28 = arith.addf %25, %27 : vector<32x256xf32>
    %c0_15 = arith.constant 0 : index
    %c0_16 = arith.constant 0 : index
    %c0_17 = arith.constant 0 : index
    %29 = vector.load %arg6[%c0_15, %c0_16, %c0_17] : memref<1x32x256xf32, #tpu.memory_space<vmem>>, vector<1x32x256xf32>
    %30 = vector.shape_cast %29 : vector<1x32x256xf32> to vector<32x256xf32>
    %31 = vector.shape_cast %28 : vector<32x256xf32> to vector<1x32x256xf32>
    tpu.vector_store %arg6[%c0_15, %c0_16, %c0_17], %31 {strides = array<i32>} : memref<1x32x256xf32, #tpu.memory_space<vmem>>, vector<1x32x256xf32>,
    return
  }
  func.func @transform_0(%arg0: i32) -> (i32, i32, i32) {
    %c0_i32 = arith.constant 0 : i32
    %c0_i32_0 = arith.constant 0 : i32
    %c0_i32_1 = arith.constant 0 : i32
    return %arg0, %c0_i32, %c0_i32_0 : i32, i32, i32
  }
  func.func @transform_1(%arg0: i32) -> (i32, i32) {
    %c0_i32 = arith.constant 0 : i32
    %c0_i32_0 = arith.constant 0 : i32
    %c0_i32_1 = arith.constant 0 : i32
    return %c0_i32, %c0_i32_0 : i32, i32
  }
  func.func @transform_2(%arg0: i32) -> (i32, i32) {
    %c0_i32 = arith.constant 0 : i32
    %c0_i32_0 = arith.constant 0 : i32
    %c0_i32_1 = arith.constant 0 : i32
    return %c0_i32, %c0_i32_0 : i32, i32
  }
  func.func @transform_3(%arg0: i32) -> (i32, i32) {
    %c0_i32 = arith.constant 0 : i32
    %c0_i32_0 = arith.constant 0 : i32
    %c0_i32_1 = arith.constant 0 : i32
    return %c0_i32, %c0_i32_0 : i32, i32
  }
  func.func @transform_4(%arg0: i32) -> (i32, i32) {
    %c0_i32 = arith.constant 0 : i32
    %c0_i32_0 = arith.constant 0 : i32
    %c0_i32_1 = arith.constant 0 : i32
    return %c0_i32, %c0_i32_0 : i32, i32
  }
  func.func @transform_5(%arg0: i32) -> (i32, i32, i32) {
    %c0_i32 = arith.constant 0 : i32
    %c0_i32_0 = arith.constant 0 : i32
    %c0_i32_1 = arith.constant 0 : i32
    return %arg0, %c0_i32, %c0_i32_0 : i32, i32, i32
  }
}

</mosaic_0001>

<llo_original>
// kernel: tpu_custom_call.1
$region0: #{tpu_custom_call.1}
  #allocation0 [shape = 'u32[]', space=smem, size = 0x4, offset = 0x4, fixed_abs, tag = 'smem constant byte address 0x4 - core index']
  #allocation1 [shape = 'u32[72,128]{1,0:T(1,128)}', space=vmem, size = 0x9000, scoped, tag = 'internal scratch']
  %s0 = inlined_call_operand.hbm [shape: f32[2,32,256], index: 0, kind: input, shape index: {}]
  %s1 = inlined_call_operand.vmem [shape: f32[32,40], index: 1, kind: input, shape index: {}]
  %s2 = inlined_call_operand.vmem [shape: f32[1,40], index: 2, kind: input, shape index: {}]
  %s3 = inlined_call_operand.hbm [shape: f32[32,32], index: 3, kind: input, shape index: {}]
  %s4 = inlined_call_operand.vmem [shape: f32[32,1], index: 4, kind: input, shape index: {}]
  %s5 = inlined_call_operand.hbm [shape: f32[2,32,256], index: 5, kind: output, shape index: {}]
  %s6 = sld [smem:[#allocation0]]
  $region61: #{tpu_custom_call.1} parent=0
    _
  %s8 = ssub.s32 1, %s6
  %s9 = scalar_select 0, %s8, %s6
  $region1: #{tpu_custom_call.1} parent=0
    #allocation2 [shape = 'u8[65536]{0}', space=vmem, size = 0x10000, scoped, tag = 'input window, operand 0']
    #allocation3 [shape = 's32[2]{0}', space=sflag, size = 0x8, scoped, tag = 'scoped memory for tpu_custom_call.1']
    #allocation4 [shape = 's32[2]{0}', space=sflag, size = 0x8, scoped, tag = 'scoped memory for tpu_custom_call.1']
    #allocation5 [shape = 'u8[16384]{0}', space=vmem, size = 0x4000, scoped, tag = 'input window, operand 3, single buffered']
    #allocation6 [shape = 's32[1]{0}', space=sflag, size = 0x4, scoped, tag = 'scoped memory for tpu_custom_call.1']
    #allocation7 [shape = 'u8[65536]{0}', space=vmem, size = 0x10000, scoped, tag = 'output window, operand 0']
    %10 = vsyncpa [#allocation3], 0
    %s11 = scalar_lea.sflag [#allocation3], 1
    %12 = vsyncpa %s11, 0
    %13 = vsyncpa [#allocation6], 0
    %14 = vsyncpa [#allocation4], 0
    %s15 = scalar_lea.sflag [#allocation4], 1
    %16 = vsyncpa %s15, 0
    loop: start=0, step=1, limit=4
    $region2: #{tpu_custom_call.1} parent=1 // loop_pre_header
      _
    $region3: #{tpu_custom_call.1} parent=1 // loop_header
      %s18 = sphi 0, %s22
      %p19 = scmp.ge.s32.totalorder %s18, 4
      %s28 = sphi 0, %s30
      %s31 = sphi 0, %s28
      %s32 = sphi 0, %s31
      %s48 = sphi 0, %s32
      %s52 = sphi 0, %s52
      %s54 = sphi 0, %s52
      %s55 = sphi 0, %s54
      %s69 = sphi 0, %s55
      %s73 = sphi 0, %s73
      %s75 = sphi 0, %s73
      %s76 = sphi 0, %s75
      %s90 = sphi 0, %s76
      %s94 = sphi 0, %s94
      %s96 = sphi 0, %s94
      %s97 = sphi 0, %s96
      %s111 = sphi 0, %s97
      %s115 = sphi 0, %s115
      %s117 = sphi 0, %s115
      %s118 = sphi 0, %s117
      %s132 = sphi 0, %s118
      %s138 = sphi 0, %s140
      %s141 = sphi 0, %s138
      %s142 = sphi 0, %s141
      %s158 = sphi 0, %s142
    $region4: #{tpu_custom_call.1} parent=1 // loop_header_branch
      %21 = sbr.rel (%p19) target = $region8
    $region5: #{tpu_custom_call.1} parent=1 // loop_body
      %s23 = ssub.s32 %s18, 1
      %s24 = ssub.s32 %s18, 2
      %s25 = sadd.s32 %s18, 1
      %s26 = ssub.s32 %s18, %s25
      %p27 = scmp.eq.s32.totalorder %s26, 0
      %s29 = sadd.s32 %s28, 1
      %s30 = scalar_select %p27, %s28, %s29
      %p33 = pneg %p27
      %p34 = scmp.eq.s32.totalorder %s18, 1
      %p35 = por %p33, %p34
      %p36 = scmp.ne.s32.totalorder %s28, %s31
      %p37 = scmp.eq.s32.totalorder %s18, 0
      %p38 = por %p36, %p37
      %p39 = scmp.ne.s32.totalorder %s28, %s31
      %p40 = scmp.eq.s32.totalorder %s23, 1
      %p41 = por %p39, %p40
      %p42 = scmp.ne.s32.totalorder %s31, %s32
      %p43 = scmp.eq.s32.totalorder %s23, 0
      %p44 = por %p42, %p43
      %p45 = scmp.ne.s32.totalorder %s31, %s32
      %p46 = scmp.eq.s32.totalorder %s24, 1
      %p47 = por %p45, %p46
      %p49 = scmp.ne.s32.totalorder %s32, %s48
      %p50 = scmp.eq.s32.totalorder %s24, 0
      %p51 = por %p49, %p50
      %s53 = sadd.s32 %s52, 1
      %p56 = scmp.eq.s32.totalorder %s18, 1
      %p57 = scmp.ne.s32.totalorder %s52, %s54
      %p58 = scmp.eq.s32.totalorder %s18, 0
      %p59 = por %p57, %p58
      %p60 = scmp.ne.s32.totalorder %s52, %s54
      %p61 = scmp.eq.s32.totalorder %s23, 1
      %p62 = por %p60, %p61
      %p63 = scmp.ne.s32.totalorder %s54, %s55
      %p64 = scmp.eq.s32.totalorder %s23, 0
      %p65 = por %p63, %p64
      %p66 = scmp.ne.s32.totalorder %s54, %s55
      %p67 = scmp.eq.s32.totalorder %s24, 1
      %p68 = por %p66, %p67
      %p70 = scmp.ne.s32.totalorder %s55, %s69
      %p71 = scmp.eq.s32.totalorder %s24, 0
      %p72 = por %p70, %p71
      %s74 = sadd.s32 %s73, 1
      %p77 = scmp.eq.s32.totalorder %s18, 1
      %p78 = scmp.ne.s32.totalorder %s73, %s75
      %p79 = scmp.eq.s32.totalorder %s18, 0
      %p80 = por %p78, %p79
      %p81 = scmp.ne.s32.totalorder %s73, %s75
      %p82 = scmp.eq.s32.totalorder %s23, 1
      %p83 = por %p81, %p82
      %p84 = scmp.ne.s32.totalorder %s75, %s76
      %p85 = scmp.eq.s32.totalorder %s23, 0
      %p86 = por %p84, %p85
      %p87 = scmp.ne.s32.totalorder %s75, %s76
      %p88 = scmp.eq.s32.totalorder %s24, 1
      %p89 = por %p87, %p88
      %p91 = scmp.ne.s32.totalorder %s76, %s90
      %p92 = scmp.eq.s32.totalorder %s24, 0
      %p93 = por %p91, %p92
      %s95 = sadd.s32 %s94, 1
      %p98 = scmp.eq.s32.totalorder %s18, 1
      %p99 = scmp.ne.s32.totalorder %s94, %s96
      %p100 = scmp.eq.s32.totalorder %s18, 0
      %p101 = por %p99, %p100
      %p102 = scmp.ne.s32.totalorder %s94, %s96
      %p103 = scmp.eq.s32.totalorder %s23, 1
      %p104 = por %p102, %p103
      %p105 = scmp.ne.s32.totalorder %s96, %s97
      %p106 = scmp.eq.s32.totalorder %s23, 0
      %p107 = por %p105, %p106
      %p108 = scmp.ne.s32.totalorder %s96, %s97
      %p109 = scmp.eq.s32.totalorder %s24, 1
      %p110 = por %p108, %p109
      %p112 = scmp.ne.s32.totalorder %s97, %s111
      %p113 = scmp.eq.s32.totalorder %s24, 0
      %p114 = por %p112, %p113
      %s116 = sadd.s32 %s115, 1
      %p119 = scmp.eq.s32.totalorder %s18, 1
      %p120 = scmp.ne.s32.totalorder %s115, %s117
      %p121 = scmp.eq.s32.totalorder %s18, 0
      %p122 = por %p120, %p121
      %p123 = scmp.ne.s32.totalorder %s115, %s117
      %p124 = scmp.eq.s32.totalorder %s23, 1
      %p125 = por %p123, %p124
      %p126 = scmp.ne.s32.totalorder %s117, %s118
      %p127 = scmp.eq.s32.totalorder %s23, 0
      %p128 = por %p126, %p127
      %p129 = scmp.ne.s32.totalorder %s117, %s118
      %p130 = scmp.eq.s32.totalorder %s24, 1
      %p131 = por %p129, %p130
      %p133 = scmp.ne.s32.totalorder %s118, %s132
      %p134 = scmp.eq.s32.totalorder %s24, 0
      %p135 = por %p133, %p134
      %s136 = ssub.s32 %s18, %s25
      %p137 = scmp.eq.s32.totalorder %s136, 0
      %s139 = sadd.s32 %s138, 1
      %s140 = scalar_select %p137, %s138, %s139
      %p143 = pneg %p137
      %p144 = scmp.eq.s32.totalorder %s18, 1
      %p145 = por %p143, %p144
      %p146 = scmp.ne.s32.totalorder %s138, %s141
      %p147 = scmp.eq.s32.totalorder %s18, 0
      %p148 = por %p146, %p147
      %p149 = scmp.ne.s32.totalorder %s138, %s141
      %p150 = scmp.eq.s32.totalorder %s23, 1
      %p151 = por %p149, %p150
      %p152 = scmp.ne.s32.totalorder %s141, %s142
      %p153 = scmp.eq.s32.totalorder %s23, 0
      %p154 = por %p152, %p153
      %p155 = scmp.ne.s32.totalorder %s141, %s142
      %p156 = scmp.eq.s32.totalorder %s24, 1
      %p157 = por %p155, %p156
      %p159 = scmp.ne.s32.totalorder %s142, %s158
      %p160 = scmp.eq.s32.totalorder %s24, 0
      %p161 = por %p159, %p160
      %p162 = scmp.le.s32.totalorder 1, %s18
      %p163 = scmp.lt.s32.totalorder %s18, 3
      %p164 = pnand %p162, %p163
      %p165 = pneg %p164
      // Predicated region
      $region9: #{tpu_custom_call.1} parent=5 // pred_check
        _
      $region10: #{tpu_custom_call.1} parent=5 // pred_check_branch
        %167 = sbr.rel (%p164) target = $region12
      $region11: #{tpu_custom_call.1} parent=5 // pred_region
        %s168 = ssub.s32 %s18, 1
        // Predicated region
        $region13: #{tpu_custom_call.1} parent=11 // pred_check
          %p169 = pneg %p65
        $region14: #{tpu_custom_call.1} parent=11 // pred_check_branch
          %171 = sbr.rel (%p169) target = $region16
        $region15: #{tpu_custom_call.1} parent=11 // pred_region
          _
        $region16: #{tpu_custom_call.1} parent=11 // pred_fallthru
          _
        // Predicated region
        $region17: #{tpu_custom_call.1} parent=11 // pred_check
          %p172 = pneg %p86
        $region18: #{tpu_custom_call.1} parent=11 // pred_check_branch
          %174 = sbr.rel (%p172) target = $region20
        $region19: #{tpu_custom_call.1} parent=11 // pred_region
          _
        $region20: #{tpu_custom_call.1} parent=11 // pred_fallthru
          _
        // Predicated region
        $region21: #{tpu_custom_call.1} parent=11 // pred_check
          %p175 = pneg %p107
        $region22: #{tpu_custom_call.1} parent=11 // pred_check_branch
          %177 = sbr.rel (%p175) target = $region24
        $region23: #{tpu_custom_call.1} parent=11 // pred_region
          %179 = vsyncadd [#allocation6], 0
          %s180 = sshll.u32 %s3, 4
          %s181 = int_to_ptr.hbm [resolvable:$true] %s180
          %s182 = sshll.u32 [#allocation5], 4
          %s183 = int_to_ptr.vmem [resolvable:$true] %s182
          %188 = dma.hbm_to_vmem [thread:$0]  %s181, 512, %s183, [#allocation6], 128, 128, 8
        $region24: #{tpu_custom_call.1} parent=11 // pred_fallthru
          _
        // Predicated region
        $region25: #{tpu_custom_call.1} parent=11 // pred_check
          %p189 = pneg %p128
        $region26: #{tpu_custom_call.1} parent=11 // pred_check_branch
          %191 = sbr.rel (%p189) target = $region28
        $region27: #{tpu_custom_call.1} parent=11 // pred_region
          _
        $region28: #{tpu_custom_call.1} parent=11 // pred_fallthru
          _
      $region12: #{tpu_custom_call.1} parent=5 // pred_fallthru
        _
      %p192 = scmp.lt.s32.totalorder %s18, 2
      // Predicated region
      $region29: #{tpu_custom_call.1} parent=5 // pred_check
        %p193 = pneg %p192
      $region30: #{tpu_custom_call.1} parent=5 // pred_check_branch
        %195 = sbr.rel (%p193) target = $region32
      $region31: #{tpu_custom_call.1} parent=5 // pred_region
        // Predicated region
        $region33: #{tpu_custom_call.1} parent=31 // pred_check
          %p196 = pneg %p38
        $region34: #{tpu_custom_call.1} parent=31 // pred_check_branch
          %198 = sbr.rel (%p196) target = $region36
        $region35: #{tpu_custom_call.1} parent=31 // pred_region
          %s199 = sand.u32 %s28, 1
          %s200 = scalar_lea.sflag [#allocation3], %s199
          %s201 = sand.u32 %s28, 1
          %s202 = smul.addr %s201, 64
          %s203 = scalar_lea.vmem [#allocation2], %s202
          %205 = vsyncadd %s200, 0
          %s206 = smul.addr %s18, 8
          %s207 = smul.addr %s206, 8
          %s208 = scalar_lea.hbm %s0, %s207
          %s209 = sshll.u32 %s208, 4
          %s210 = int_to_ptr.hbm [resolvable:$true] %s209
          %s211 = sshll.u32 %s203, 4
          %s212 = int_to_ptr.vmem [resolvable:$true] %s211
          %217 = dma.hbm_to_vmem [thread:$0]  %s210, 1024, %s212, %s200, 256, 256, 16
        $region36: #{tpu_custom_call.1} parent=31 // pred_fallthru
          _
      $region32: #{tpu_custom_call.1} parent=5 // pred_fallthru
        _
      %p218 = scmp.le.s32.totalorder 1, %s18
      %p219 = scmp.lt.s32.totalorder %s18, 3
      %p220 = pnand %p218, %p219
      %p221 = pneg %p220
      // Predicated region
      $region37: #{tpu_custom_call.1} parent=5 // pred_check
        _
      $region38: #{tpu_custom_call.1} parent=5 // pred_check_branch
        %223 = sbr.rel (%p220) target = $region40
      $region39: #{tpu_custom_call.1} parent=5 // pred_region
        %s224 = ssub.s32 %s18, 1
        %s225 = sand.u32 %s31, 1
        %s226 = scalar_lea.sflag [#allocation3], %s225
        %s227 = sand.u32 %s31, 1
        %s228 = smul.addr %s227, 64
        %s229 = scalar_lea.vmem [#allocation2], %s228
        // Predicated region
        $region41: #{tpu_custom_call.1} parent=39 // pred_check
          %p230 = pneg %p44
        $region42: #{tpu_custom_call.1} parent=39 // pred_check_branch
          %232 = sbr.rel (%p230) target = $region44
        $region43: #{tpu_custom_call.1} parent=39 // pred_region
          %234 = dma.done %s226, 1024
        $region44: #{tpu_custom_call.1} parent=39 // pred_fallthru
          _
        // Predicated region
        $region45: #{tpu_custom_call.1} parent=39 // pred_check
          %p235 = pneg %p107
        $region46: #{tpu_custom_call.1} parent=39 // pred_check_branch
          %237 = sbr.rel (%p235) target = $region48
        $region47: #{tpu_custom_call.1} parent=39 // pred_region
          %239 = dma.done [#allocation6], 512
        $region48: #{tpu_custom_call.1} parent=39 // pred_fallthru
          _
        %s240 = sand.u32 %s31, 1
        %s241 = scalar_lea.sflag [#allocation3], %s240
        %s242 = sand.u32 %s31, 1
        %s243 = smul.addr %s242, 64
        %s244 = scalar_lea.vmem [#allocation2], %s243
        %p245 = pneg %p44
        %p246 = pneg %p41
        %p247 = pneg %p65
        %p248 = pneg %p62
        %p249 = pneg %p86
        %p250 = pneg %p83
        %p251 = pneg %p107
        %p252 = pneg %p104
        %p253 = pneg %p128
        %p254 = pneg %p125
        %p255 = pneg %p154
        %p256 = pneg %p151
        %s257 = sand.u32 %s141, 1
        %s258 = scalar_lea.sflag [#allocation4], %s257
        %s259 = sand.u32 %s141, 1
        %s260 = smul.addr %s259, 64
        %s261 = scalar_lea.vmem [#allocation7], %s260
        %v262 = vld [vmem:[%s229] sm:$0xff]
        %v263 = vld [vmem:[%s229 + $0x8] sm:$0xff]
        %v264 = vld [vmem:[%s229 + $0x10] sm:$0xff]
        %v265 = vld [vmem:[%s229 + $0x18] sm:$0xff]
        %v266 = vld [vmem:[%s229 + $0x20] sm:$0xff]
        %v267 = vld [vmem:[%s229 + $0x28] sm:$0xff]
        %v268 = vld [vmem:[%s229 + $0x30] sm:$0xff]
        %v269 = vld [vmem:[%s229 + $0x38] sm:$0xff]
        %270 = vxpose.xlu0.b32.start [1/16] %v262, 128
        %271 = vxpose.xlu0.b32.cont [2/16] %v264, 128
        %272 = vxpose.xlu0.b32.cont [3/16] %v266, 128
        %273 = vxpose.xlu0.b32.cont [4/16] %v268, 128
        %274 = vxpose.xlu0.b32.cont [5/16] 0.0, 128
        %275 = vxpose.xlu0.b32.cont [6/16] 0.0, 128
        %276 = vxpose.xlu0.b32.cont [7/16] 0.0, 128
        %277 = vxpose.xlu0.b32.cont [8/16] 0.0, 128
        %278 = vxpose.xlu0.b32.cont [9/16] 0.0, 128
        %279 = vxpose.xlu0.b32.cont [10/16] 0.0, 128
        %280 = vxpose.xlu0.b32.cont [11/16] 0.0, 128
        %281 = vxpose.xlu0.b32.cont [12/16] 0.0, 128
        %282 = vxpose.xlu0.b32.cont [13/16] 0.0, 128
        %283 = vxpose.xlu0.b32.cont [14/16] 0.0, 128
        %284 = vxpose.xlu0.b32.cont [15/16] 0.0, 128
        %285 = vxpose.xlu0.b32.end [16/16] 0.0, 128
        %v286 = vpop.trf.xlu0
        %v287 = vpop.trf.xlu0
        %v288 = vpop.trf.xlu0
        %v289 = vpop.trf.xlu0
        %v290 = vpop.trf.xlu0
        %v291 = vpop.trf.xlu0
        %v292 = vpop.trf.xlu0
        %v293 = vpop.trf.xlu0
        %v294 = vpop.trf.xlu0
        %v295 = vpop.trf.xlu0
        %v296 = vpop.trf.xlu0
        %v297 = vpop.trf.xlu0
        %v298 = vpop.trf.xlu0
        %v299 = vpop.trf.xlu0
        %v300 = vpop.trf.xlu0
        %v301 = vpop.trf.xlu0
        %302 = vxpose.xlu0.b32.start [1/16] %v263, 128
        %303 = vxpose.xlu0.b32.cont [2/16] %v265, 128
        %304 = vxpose.xlu0.b32.cont [3/16] %v267, 128
        %305 = vxpose.xlu0.b32.cont [4/16] %v269, 128
        %306 = vxpose.xlu0.b32.cont [5/16] 0.0, 128
        %307 = vxpose.xlu0.b32.cont [6/16] 0.0, 128
        %308 = vxpose.xlu0.b32.cont [7/16] 0.0, 128
        %309 = vxpose.xlu0.b32.cont [8/16] 0.0, 128
        %310 = vxpose.xlu0.b32.cont [9/16] 0.0, 128
        %311 = vxpose.xlu0.b32.cont [10/16] 0.0, 128
        %312 = vxpose.xlu0.b32.cont [11/16] 0.0, 128
        %313 = vxpose.xlu0.b32.cont [12/16] 0.0, 128
        %314 = vxpose.xlu0.b32.cont [13/16] 0.0, 128
        %315 = vxpose.xlu0.b32.cont [14/16] 0.0, 128
        %316 = vxpose.xlu0.b32.cont [15/16] 0.0, 128
        %317 = vxpose.xlu0.b32.end [16/16] 0.0, 128
        %v318 = vpop.trf.xlu0
        %v319 = vpop.trf.xlu0
        %v320 = vpop.trf.xlu0
        %v321 = vpop.trf.xlu0
        %v322 = vpop.trf.xlu0
        %v323 = vpop.trf.xlu0
        %v324 = vpop.trf.xlu0
        %v325 = vpop.trf.xlu0
        %v326 = vpop.trf.xlu0
        %v327 = vpop.trf.xlu0
        %v328 = vpop.trf.xlu0
        %v329 = vpop.trf.xlu0
        %v330 = vpop.trf.xlu0
        %v331 = vpop.trf.xlu0
        %v332 = vpop.trf.xlu0
        %v333 = vpop.trf.xlu0
        %v334 = vld [vmem:[%s1] sm:$0xff]
        %v335 = vld [vmem:[%s1 + $0x8] sm:$0xff]
        %v336 = vld [vmem:[%s1 + $0x10] sm:$0xff]
        %v337 = vld [vmem:[%s1 + $0x18] sm:$0xff]
        %v338 = vld [vmem:[%s2] sm:$0x1]
        %v340 = vperm.slane %v338, 0
        %vm342 = vcmask 261120
        %v344 = vsel %vm342, %v286, 0
        %v347 = vsel %vm342, %v287, 0
        %v350 = vsel %vm342, %v288, 0
        %v353 = vsel %vm342, %v289, 0
        %v356 = vsel %vm342, %v290, 0
        %v359 = vsel %vm342, %v291, 0
        %v362 = vsel %vm342, %v292, 0
        %v365 = vsel %vm342, %v293, 0
        %v368 = vsel %vm342, %v294, 0
        %v371 = vsel %vm342, %v295, 0
        %v374 = vsel %vm342, %v296, 0
        %v377 = vsel %vm342, %v297, 0
        %v380 = vsel %vm342, %v298, 0
        %v383 = vsel %vm342, %v299, 0
        %v386 = vsel %vm342, %v300, 0
        %v389 = vsel %vm342, %v301, 0
        %v392 = vsel %vm342, %v318, 0
        %v395 = vsel %vm342, %v319, 0
        %v398 = vsel %vm342, %v320, 0
        %v401 = vsel %vm342, %v321, 0
        %v404 = vsel %vm342, %v322, 0
        %v407 = vsel %vm342, %v323, 0
        %v410 = vsel %vm342, %v324, 0
        %v413 = vsel %vm342, %v325, 0
        %v416 = vsel %vm342, %v326, 0
        %v419 = vsel %vm342, %v327, 0
        %v422 = vsel %vm342, %v328, 0
        %v425 = vsel %vm342, %v329, 0
        %v428 = vsel %vm342, %v330, 0
        %v431 = vsel %vm342, %v331, 0
        %v434 = vsel %vm342, %v332, 0
        %v437 = vsel %vm342, %v333, 0
        %439 = vmatpush.msra.mxu0 0.0
        %440 = vmatpush.msra.mxu0 0.0
        %441 = vmatpush.msra.mxu0 0.0
        %442 = vmatpush.msra.mxu0 0.0
        %443 = vmatpush.msra.mxu0 0.0
        %444 = vmatpush.msra.mxu0 0.0
        %445 = vmatpush.msra.mxu0 0.0
        %446 = vmatpush.msra.mxu0 0.0
        %447 = vmatpush.msra.mxu0 0.0
        %448 = vmatpush.msra.mxu0 0.0
        %449 = vmatpush.msra.mxu0 0.0
        %450 = vmatpush.msra.mxu0 0.0
        %451 = vmatpush.msra.mxu0 %v337
        %452 = vmatpush.msra.mxu0 %v336
        %453 = vmatpush.msra.mxu0 %v335
        %454 = vmatpush.msra.mxu0 %v334
        %455 = vmatmul.f32.gmra.mxu0 %v344
        %v456 = vpop.f32.mrf.mxu0
        %v457 = vadd.f32 %v340, %v456
        %458 = vmatmul.f32.gmra.mxu0 %v347
        %v459 = vpop.f32.mrf.mxu0
        %v460 = vadd.f32 %v340, %v459
        %461 = vmatmul.f32.gmra.mxu0 %v350
        %v462 = vpop.f32.mrf.mxu0
        %v463 = vadd.f32 %v340, %v462
        %464 = vmatmul.f32.gmra.mxu0 %v353
        %v465 = vpop.f32.mrf.mxu0
        %v466 = vadd.f32 %v340, %v465
        %467 = vmatmul.f32.gmra.mxu0 %v356
        %v468 = vpop.f32.mrf.mxu0
        %v469 = vadd.f32 %v340, %v468
        %470 = vmatmul.f32.gmra.mxu0 %v359
        %v471 = vpop.f32.mrf.mxu0
        %v472 = vadd.f32 %v340, %v471
        %473 = vmatmul.f32.gmra.mxu0 %v362
        %v474 = vpop.f32.mrf.mxu0
        %v475 = vadd.f32 %v340, %v474
        %476 = vmatmul.f32.gmra.mxu0 %v365
        %v477 = vpop.f32.mrf.mxu0
        %v478 = vadd.f32 %v340, %v477
        %479 = vmatmul.f32.gmra.mxu0 %v368
        %v480 = vpop.f32.mrf.mxu0
        %v481 = vadd.f32 %v340, %v480
        %482 = vmatmul.f32.gmra.mxu0 %v371
        %v483 = vpop.f32.mrf.mxu0
        %v484 = vadd.f32 %v340, %v483
        %485 = vmatmul.f32.gmra.mxu0 %v374
        %v486 = vpop.f32.mrf.mxu0
        %v487 = vadd.f32 %v340, %v486
        %488 = vmatmul.f32.gmra.mxu0 %v377
        %v489 = vpop.f32.mrf.mxu0
        %v490 = vadd.f32 %v340, %v489
        %491 = vmatmul.f32.gmra.mxu0 %v380
        %v492 = vpop.f32.mrf.mxu0
        %v493 = vadd.f32 %v340, %v492
        %494 = vmatmul.f32.gmra.mxu0 %v383
        %v495 = vpop.f32.mrf.mxu0
        %v496 = vadd.f32 %v340, %v495
        %497 = vmatmul.f32.gmra.mxu0 %v386
        %v498 = vpop.f32.mrf.mxu0
        %v499 = vadd.f32 %v340, %v498
        %500 = vmatmul.f32.gmra.mxu0 %v389
        %v501 = vpop.f32.mrf.mxu0
        %v502 = vadd.f32 %v340, %v501
        %503 = vmatmul.f32.gmra.mxu0 %v392
        %v504 = vpop.f32.mrf.mxu0
        %v505 = vadd.f32 %v340, %v504
        %506 = vmatmul.f32.gmra.mxu0 %v395
        %v507 = vpop.f32.mrf.mxu0
        %v508 = vadd.f32 %v340, %v507
        %509 = vmatmul.f32.gmra.mxu0 %v398
        %v510 = vpop.f32.mrf.mxu0
        %v511 = vadd.f32 %v340, %v510
        %512 = vmatmul.f32.gmra.mxu0 %v401
        %v513 = vpop.f32.mrf.mxu0
        %v514 = vadd.f32 %v340, %v513
        %515 = vmatmul.f32.gmra.mxu0 %v404
        %v516 = vpop.f32.mrf.mxu0
        %v517 = vadd.f32 %v340, %v516
        %518 = vmatmul.f32.gmra.mxu0 %v407
        %v519 = vpop.f32.mrf.mxu0
        %v520 = vadd.f32 %v340, %v519
        %521 = vmatmul.f32.gmra.mxu0 %v410
        %v522 = vpop.f32.mrf.mxu0
        %v523 = vadd.f32 %v340, %v522
        %524 = vmatmul.f32.gmra.mxu0 %v413
        %v525 = vpop.f32.mrf.mxu0
        %v526 = vadd.f32 %v340, %v525
        %527 = vmatmul.f32.gmra.mxu0 %v416
        %v528 = vpop.f32.mrf.mxu0
        %v529 = vadd.f32 %v340, %v528
        %530 = vmatmul.f32.gmra.mxu0 %v419
        %v531 = vpop.f32.mrf.mxu0
        %v532 = vadd.f32 %v340, %v531
        %533 = vmatmul.f32.gmra.mxu0 %v422
        %v534 = vpop.f32.mrf.mxu0
        %v535 = vadd.f32 %v340, %v534
        %536 = vmatmul.f32.gmra.mxu0 %v425
        %v537 = vpop.f32.mrf.mxu0
        %v538 = vadd.f32 %v340, %v537
        %539 = vmatmul.f32.gmra.mxu0 %v428
        %v540 = vpop.f32.mrf.mxu0
        %v541 = vadd.f32 %v340, %v540
        %542 = vmatmul.f32.gmra.mxu0 %v431
        %v543 = vpop.f32.mrf.mxu0
        %v544 = vadd.f32 %v340, %v543
        %545 = vmatmul.f32.gmra.mxu0 %v434
        %v546 = vpop.f32.mrf.mxu0
        %v547 = vadd.f32 %v340, %v546
        %548 = vmatmul.f32.gmra.mxu0 %v437
        %v549 = vpop.f32.mrf.mxu0
        %v550 = vadd.f32 %v340, %v549
        %551 = vdwg.mxu0
        %584 = vrot.lane.b32.xlu0 %v457, 124
        %v585 = vpop.permute.xlu0 %584
        %586 = vrot.lane.b32.xlu0 %v460, 124
        %v587 = vpop.permute.xlu0 %586
        %588 = vrot.lane.b32.xlu0 %v463, 124
        %v589 = vpop.permute.xlu0 %588
        %590 = vrot.lane.b32.xlu0 %v466, 124
        %v591 = vpop.permute.xlu0 %590
        %592 = vrot.lane.b32.xlu0 %v469, 124
        %v593 = vpop.permute.xlu0 %592
        %594 = vrot.lane.b32.xlu0 %v472, 124
        %v595 = vpop.permute.xlu0 %594
        %596 = vrot.lane.b32.xlu0 %v475, 124
        %v597 = vpop.permute.xlu0 %596
        %598 = vrot.lane.b32.xlu0 %v478, 124
        %v599 = vpop.permute.xlu0 %598
        %600 = vrot.lane.b32.xlu0 %v481, 124
        %v601 = vpop.permute.xlu0 %600
        %602 = vrot.lane.b32.xlu0 %v484, 124
        %v603 = vpop.permute.xlu0 %602
        %604 = vrot.lane.b32.xlu0 %v487, 124
        %v605 = vpop.permute.xlu0 %604
        %606 = vrot.lane.b32.xlu0 %v490, 124
        %v607 = vpop.permute.xlu0 %606
        %608 = vrot.lane.b32.xlu0 %v493, 124
        %v609 = vpop.permute.xlu0 %608
        %610 = vrot.lane.b32.xlu0 %v496, 124
        %v611 = vpop.permute.xlu0 %610
        %612 = vrot.lane.b32.xlu0 %v499, 124
        %v613 = vpop.permute.xlu0 %612
        %614 = vrot.lane.b32.xlu0 %v502, 124
        %v615 = vpop.permute.xlu0 %614
        %616 = vrot.lane.b32.xlu0 %v505, 124
        %v617 = vpop.permute.xlu0 %616
        %618 = vrot.lane.b32.xlu0 %v508, 124
        %v619 = vpop.permute.xlu0 %618
        %620 = vrot.lane.b32.xlu0 %v511, 124
        %v621 = vpop.permute.xlu0 %620
        %622 = vrot.lane.b32.xlu0 %v514, 124
        %v623 = vpop.permute.xlu0 %622
        %624 = vrot.lane.b32.xlu0 %v517, 124
        %v625 = vpop.permute.xlu0 %624
        %626 = vrot.lane.b32.xlu0 %v520, 124
        %v627 = vpop.permute.xlu0 %626
        %628 = vrot.lane.b32.xlu0 %v523, 124
        %v629 = vpop.permute.xlu0 %628
        %630 = vrot.lane.b32.xlu0 %v526, 124
        %v631 = vpop.permute.xlu0 %630
        %632 = vrot.lane.b32.xlu0 %v529, 124
        %v633 = vpop.permute.xlu0 %632
        %634 = vrot.lane.b32.xlu0 %v532, 124
        %v635 = vpop.permute.xlu0 %634
        %636 = vrot.lane.b32.xlu0 %v535, 124
        %v637 = vpop.permute.xlu0 %636
        %638 = vrot.lane.b32.xlu0 %v538, 124
        %v639 = vpop.permute.xlu0 %638
        %640 = vrot.lane.b32.xlu0 %v541, 124
        %v641 = vpop.permute.xlu0 %640
        %642 = vrot.lane.b32.xlu0 %v544, 124
        %v643 = vpop.permute.xlu0 %642
        %644 = vrot.lane.b32.xlu0 %v547, 124
        %v645 = vpop.permute.xlu0 %644
        %646 = vrot.lane.b32.xlu0 %v550, 124
        %v647 = vpop.permute.xlu0 %646
        %vm648 = vcmask 31744
        %v649 = vsel %vm648, %v457, 0
        %v651 = vsel %vm648, %v460, 0
        %v653 = vsel %vm648, %v463, 0
        %v655 = vsel %vm648, %v466, 0
        %v657 = vsel %vm648, %v469, 0
        %v659 = vsel %vm648, %v472, 0
        %v661 = vsel %vm648, %v475, 0
        %v663 = vsel %vm648, %v478, 0
        %v665 = vsel %vm648, %v481, 0
        %v667 = vsel %vm648, %v484, 0
        %v669 = vsel %vm648, %v487, 0
        %v671 = vsel %vm648, %v490, 0
        %v673 = vsel %vm648, %v493, 0
        %v675 = vsel %vm648, %v496, 0
        %v677 = vsel %vm648, %v499, 0
        %v679 = vsel %vm648, %v502, 0
        %v681 = vsel %vm648, %v505, 0
        %v683 = vsel %vm648, %v508, 0
        %v685 = vsel %vm648, %v511, 0
        %v687 = vsel %vm648, %v514, 0
        %v689 = vsel %vm648, %v517, 0
        %v691 = vsel %vm648, %v520, 0
        %v693 = vsel %vm648, %v523, 0
        %v695 = vsel %vm648, %v526, 0
        %v697 = vsel %vm648, %v529, 0
        %v699 = vsel %vm648, %v532, 0
        %v701 = vsel %vm648, %v535, 0
        %v703 = vsel %vm648, %v538, 0
        %v705 = vsel %vm648, %v541, 0
        %v707 = vsel %vm648, %v544, 0
        %v709 = vsel %vm648, %v547, 0
        %v711 = vsel %vm648, %v550, 0
        %v713 = vsel %vm648, %v585, 0
        %v715 = vsel %vm648, %v587, 0
        %v717 = vsel %vm648, %v589, 0
        %v719 = vsel %vm648, %v591, 0
        %v721 = vsel %vm648, %v593, 0
        %v723 = vsel %vm648, %v595, 0
        %v725 = vsel %vm648, %v597, 0
        %v727 = vsel %vm648, %v599, 0
        %v729 = vsel %vm648, %v601, 0
        %v731 = vsel %vm648, %v603, 0
        %v733 = vsel %vm648, %v605, 0
        %v735 = vsel %vm648, %v607, 0
        %v737 = vsel %vm648, %v609, 0
        %v739 = vsel %vm648, %v611, 0
        %v741 = vsel %vm648, %v613, 0
        %v743 = vsel %vm648, %v615, 0
        %v745 = vsel %vm648, %v617, 0
        %v747 = vsel %vm648, %v619, 0
        %v749 = vsel %vm648, %v621, 0
        %v751 = vsel %vm648, %v623, 0
        %v753 = vsel %vm648, %v625, 0
        %v755 = vsel %vm648, %v627, 0
        %v757 = vsel %vm648, %v629, 0
        %v759 = vsel %vm648, %v631, 0
        %v761 = vsel %vm648, %v633, 0
        %v763 = vsel %vm648, %v635, 0
        %v765 = vsel %vm648, %v637, 0
        %v767 = vsel %vm648, %v639, 0
        %v769 = vsel %vm648, %v641, 0
        %v771 = vsel %vm648, %v643, 0
        %v773 = vsel %vm648, %v645, 0
        %v775 = vsel %vm648, %v647, 0
        %777 = vmatpush.xpose.msra.mxu0 %v743
        %778 = vmatpush.xpose.msra.mxu0 %v741
        %779 = vmatpush.xpose.msra.mxu0 %v739
        %780 = vmatpush.xpose.msra.mxu0 %v737
        %781 = vmatpush.xpose.msra.mxu0 %v735
        %782 = vmatpush.xpose.msra.mxu0 %v733
        %783 = vmatpush.xpose.msra.mxu0 %v731
        %784 = vmatpush.xpose.msra.mxu0 %v729
        %785 = vmatpush.xpose.msra.mxu0 %v727
        %786 = vmatpush.xpose.msra.mxu0 %v725
        %787 = vmatpush.xpose.msra.mxu0 %v723
        %788 = vmatpush.xpose.msra.mxu0 %v721
        %789 = vmatpush.xpose.msra.mxu0 %v719
        %790 = vmatpush.xpose.msra.mxu0 %v717
        %791 = vmatpush.xpose.msra.mxu0 %v715
        %792 = vmatpush.xpose.msra.mxu0 %v713
        %793 = vmatmul.f32.gmra.mxu0 %v649
        %v794 = vpop.f32.mrf.mxu0
        %v795 = vadd.f32 0.0, %v794
        %796 = vmatmul.f32.gmra.mxu0 %v651
        %v797 = vpop.f32.mrf.mxu0
        %v798 = vadd.f32 0.0, %v797
        %799 = vmatmul.f32.gmra.mxu0 %v653
        %v800 = vpop.f32.mrf.mxu0
        %v801 = vadd.f32 0.0, %v800
        %802 = vmatmul.f32.gmra.mxu0 %v655
        %v803 = vpop.f32.mrf.mxu0
        %v804 = vadd.f32 0.0, %v803
        %805 = vmatmul.f32.gmra.mxu0 %v657
        %v806 = vpop.f32.mrf.mxu0
        %v807 = vadd.f32 0.0, %v806
        %808 = vmatmul.f32.gmra.mxu0 %v659
        %v809 = vpop.f32.mrf.mxu0
        %v810 = vadd.f32 0.0, %v809
        %811 = vmatmul.f32.gmra.mxu0 %v661
        %v812 = vpop.f32.mrf.mxu0
        %v813 = vadd.f32 0.0, %v812
        %814 = vmatmul.f32.gmra.mxu0 %v663
        %v815 = vpop.f32.mrf.mxu0
        %v816 = vadd.f32 0.0, %v815
        %817 = vmatmul.f32.gmra.mxu0 %v665
        %v818 = vpop.f32.mrf.mxu0
        %v819 = vadd.f32 0.0, %v818
        %820 = vmatmul.f32.gmra.mxu0 %v667
        %v821 = vpop.f32.mrf.mxu0
        %v822 = vadd.f32 0.0, %v821
        %823 = vmatmul.f32.gmra.mxu0 %v669
        %v824 = vpop.f32.mrf.mxu0
        %v825 = vadd.f32 0.0, %v824
        %826 = vmatmul.f32.gmra.mxu0 %v671
        %v827 = vpop.f32.mrf.mxu0
        %v828 = vadd.f32 0.0, %v827
        %829 = vmatmul.f32.gmra.mxu0 %v673
        %v830 = vpop.f32.mrf.mxu0
        %v831 = vadd.f32 0.0, %v830
        %832 = vmatmul.f32.gmra.mxu0 %v675
        %v833 = vpop.f32.mrf.mxu0
        %v834 = vadd.f32 0.0, %v833
        %835 = vmatmul.f32.gmra.mxu0 %v677
        %v836 = vpop.f32.mrf.mxu0
        %v837 = vadd.f32 0.0, %v836
        %838 = vmatmul.f32.gmra.mxu0 %v679
        %v839 = vpop.f32.mrf.mxu0
        %v840 = vadd.f32 0.0, %v839
        %841 = vmatmul.f32.gmra.mxu0 %v681
        %v842 = vpop.f32.mrf.mxu0
        %v843 = vadd.f32 0.0, %v842
        %844 = vmatmul.f32.gmra.mxu0 %v683
        %v845 = vpop.f32.mrf.mxu0
        %v846 = vadd.f32 0.0, %v845
        %847 = vmatmul.f32.gmra.mxu0 %v685
        %v848 = vpop.f32.mrf.mxu0
        %v849 = vadd.f32 0.0, %v848
        %850 = vmatmul.f32.gmra.mxu0 %v687
        %v851 = vpop.f32.mrf.mxu0
        %v852 = vadd.f32 0.0, %v851
        %853 = vmatmul.f32.gmra.mxu0 %v689
        %v854 = vpop.f32.mrf.mxu0
        %v855 = vadd.f32 0.0, %v854
        %856 = vmatmul.f32.gmra.mxu0 %v691
        %v857 = vpop.f32.mrf.mxu0
        %v858 = vadd.f32 0.0, %v857
        %859 = vmatmul.f32.gmra.mxu0 %v693
        %v860 = vpop.f32.mrf.mxu0
        %v861 = vadd.f32 0.0, %v860
        %862 = vmatmul.f32.gmra.mxu0 %v695
        %v863 = vpop.f32.mrf.mxu0
        %v864 = vadd.f32 0.0, %v863
        %865 = vmatmul.f32.gmra.mxu0 %v697
        %v866 = vpop.f32.mrf.mxu0
        %v867 = vadd.f32 0.0, %v866
        %868 = vmatmul.f32.gmra.mxu0 %v699
        %v869 = vpop.f32.mrf.mxu0
        %v870 = vadd.f32 0.0, %v869
        %871 = vmatmul.f32.gmra.mxu0 %v701
        %v872 = vpop.f32.mrf.mxu0
        %v873 = vadd.f32 0.0, %v872
        %874 = vmatmul.f32.gmra.mxu0 %v703
        %v875 = vpop.f32.mrf.mxu0
        %v876 = vadd.f32 0.0, %v875
        %877 = vmatmul.f32.gmra.mxu0 %v705
        %v878 = vpop.f32.mrf.mxu0
        %v879 = vadd.f32 0.0, %v878
        %880 = vmatmul.f32.gmra.mxu0 %v707
        %v881 = vpop.f32.mrf.mxu0
        %v882 = vadd.f32 0.0, %v881
        %883 = vmatmul.f32.gmra.mxu0 %v709
        %v884 = vpop.f32.mrf.mxu0
        %v885 = vadd.f32 0.0, %v884
        %886 = vmatmul.f32.gmra.mxu0 %v711
        %v887 = vpop.f32.mrf.mxu0
        %v888 = vadd.f32 0.0, %v887
        %889 = vdwg.mxu0
        %890 = vmatpush.xpose.msra.mxu0 %v775
        %891 = vmatpush.xpose.msra.mxu0 %v773
        %892 = vmatpush.xpose.msra.mxu0 %v771
        %893 = vmatpush.xpose.msra.mxu0 %v769
        %894 = vmatpush.xpose.msra.mxu0 %v767
        %895 = vmatpush.xpose.msra.mxu0 %v765
        %896 = vmatpush.xpose.msra.mxu0 %v763
        %897 = vmatpush.xpose.msra.mxu0 %v761
        %898 = vmatpush.xpose.msra.mxu0 %v759
        %899 = vmatpush.xpose.msra.mxu0 %v757
        %900 = vmatpush.xpose.msra.mxu0 %v755
        %901 = vmatpush.xpose.msra.mxu0 %v753
        %902 = vmatpush.xpose.msra.mxu0 %v751
        %903 = vmatpush.xpose.msra.mxu0 %v749
        %904 = vmatpush.xpose.msra.mxu0 %v747
        %905 = vmatpush.xpose.msra.mxu0 %v745
        %906 = vmatmul.f32.gmra.mxu0 %v649
        %v907 = vpop.f32.mrf.mxu0
        %v908 = vadd.f32 0.0, %v907
        %909 = vmatmul.f32.gmra.mxu0 %v651
        %v910 = vpop.f32.mrf.mxu0
        %v911 = vadd.f32 0.0, %v910
        %912 = vmatmul.f32.gmra.mxu0 %v653
        %v913 = vpop.f32.mrf.mxu0
        %v914 = vadd.f32 0.0, %v913
        %915 = vmatmul.f32.gmra.mxu0 %v655
        %v916 = vpop.f32.mrf.mxu0
        %v917 = vadd.f32 0.0, %v916
        %918 = vmatmul.f32.gmra.mxu0 %v657
        %v919 = vpop.f32.mrf.mxu0
        %v920 = vadd.f32 0.0, %v919
        %921 = vmatmul.f32.gmra.mxu0 %v659
        %v922 = vpop.f32.mrf.mxu0
        %v923 = vadd.f32 0.0, %v922
        %924 = vmatmul.f32.gmra.mxu0 %v661
        %v925 = vpop.f32.mrf.mxu0
        %v926 = vadd.f32 0.0, %v925
        %927 = vmatmul.f32.gmra.mxu0 %v663
        %v928 = vpop.f32.mrf.mxu0
        %v929 = vadd.f32 0.0, %v928
        %930 = vmatmul.f32.gmra.mxu0 %v665
        %v931 = vpop.f32.mrf.mxu0
        %v932 = vadd.f32 0.0, %v931
        %933 = vmatmul.f32.gmra.mxu0 %v667
        %v934 = vpop.f32.mrf.mxu0
        %v935 = vadd.f32 0.0, %v934
        %936 = vmatmul.f32.gmra.mxu0 %v669
        %v937 = vpop.f32.mrf.mxu0
        %v938 = vadd.f32 0.0, %v937
        %939 = vmatmul.f32.gmra.mxu0 %v671
        %v940 = vpop.f32.mrf.mxu0
        %v941 = vadd.f32 0.0, %v940
        %942 = vmatmul.f32.gmra.mxu0 %v673
        %v943 = vpop.f32.mrf.mxu0
        %v944 = vadd.f32 0.0, %v943
        %945 = vmatmul.f32.gmra.mxu0 %v675
        %v946 = vpop.f32.mrf.mxu0
        %v947 = vadd.f32 0.0, %v946
        %948 = vmatmul.f32.gmra.mxu0 %v677
        %v949 = vpop.f32.mrf.mxu0
        %v950 = vadd.f32 0.0, %v949
        %951 = vmatmul.f32.gmra.mxu0 %v679
        %v952 = vpop.f32.mrf.mxu0
        %v953 = vadd.f32 0.0, %v952
        %954 = vmatmul.f32.gmra.mxu0 %v681
        %v955 = vpop.f32.mrf.mxu0
        %v956 = vadd.f32 0.0, %v955
        %957 = vmatmul.f32.gmra.mxu0 %v683
        %v958 = vpop.f32.mrf.mxu0
        %v959 = vadd.f32 0.0, %v958
        %960 = vmatmul.f32.gmra.mxu0 %v685
        %v961 = vpop.f32.mrf.mxu0
        %v962 = vadd.f32 0.0, %v961
        %963 = vmatmul.f32.gmra.mxu0 %v687
        %v964 = vpop.f32.mrf.mxu0
        %v965 = vadd.f32 0.0, %v964
        %966 = vmatmul.f32.gmra.mxu0 %v689
        %v967 = vpop.f32.mrf.mxu0
        %v968 = vadd.f32 0.0, %v967
        %969 = vmatmul.f32.gmra.mxu0 %v691
        %v970 = vpop.f32.mrf.mxu0
        %v971 = vadd.f32 0.0, %v970
        %972 = vmatmul.f32.gmra.mxu0 %v693
        %v973 = vpop.f32.mrf.mxu0
        %v974 = vadd.f32 0.0, %v973
        %975 = vmatmul.f32.gmra.mxu0 %v695
        %v976 = vpop.f32.mrf.mxu0
        %v977 = vadd.f32 0.0, %v976
        %978 = vmatmul.f32.gmra.mxu0 %v697
        %v979 = vpop.f32.mrf.mxu0
        %v980 = vadd.f32 0.0, %v979
        %981 = vmatmul.f32.gmra.mxu0 %v699
        %v982 = vpop.f32.mrf.mxu0
        %v983 = vadd.f32 0.0, %v982
        %984 = vmatmul.f32.gmra.mxu0 %v701
        %v985 = vpop.f32.mrf.mxu0
        %v986 = vadd.f32 0.0, %v985
        %987 = vmatmul.f32.gmra.mxu0 %v703
        %v988 = vpop.f32.mrf.mxu0
        %v989 = vadd.f32 0.0, %v988
        %990 = vmatmul.f32.gmra.mxu0 %v705
        %v991 = vpop.f32.mrf.mxu0
        %v992 = vadd.f32 0.0, %v991
        %993 = vmatmul.f32.gmra.mxu0 %v707
        %v994 = vpop.f32.mrf.mxu0
        %v995 = vadd.f32 0.0, %v994
        %996 = vmatmul.f32.gmra.mxu0 %v709
        %v997 = vpop.f32.mrf.mxu0
        %v998 = vadd.f32 0.0, %v997
        %999 = vmatmul.f32.gmra.mxu0 %v711
        %v1000 = vpop.f32.mrf.mxu0
        %v1001 = vadd.f32 0.0, %v1000
        %1002 = vdwg.mxu0
        %v1003 = vmax.f32 %v795, %v908
        %1004 = vmax.xlane.f32.xlu0 %v1003
        %v1005 = vpop.xlane.xlu0 %1004
        %v1006 = vmax.f32 %v798, %v911
        %1007 = vmax.xlane.f32.xlu0 %v1006
        %v1008 = vpop.xlane.xlu0 %1007
        %v1009 = vmax.f32 %v801, %v914
        %1010 = vmax.xlane.f32.xlu0 %v1009
        %v1011 = vpop.xlane.xlu0 %1010
        %v1012 = vmax.f32 %v804, %v917
        %1013 = vmax.xlane.f32.xlu0 %v1012
        %v1014 = vpop.xlane.xlu0 %1013
        %v1015 = vmax.f32 %v807, %v920
        %1016 = vmax.xlane.f32.xlu0 %v1015
        %v1017 = vpop.xlane.xlu0 %1016
        %v1018 = vmax.f32 %v810, %v923
        %1019 = vmax.xlane.f32.xlu0 %v1018
        %v1020 = vpop.xlane.xlu0 %1019
        %v1021 = vmax.f32 %v813, %v926
        %1022 = vmax.xlane.f32.xlu0 %v1021
        %v1023 = vpop.xlane.xlu0 %1022
        %v1024 = vmax.f32 %v816, %v929
        %1025 = vmax.xlane.f32.xlu0 %v1024
        %v1026 = vpop.xlane.xlu0 %1025
        %v1027 = vmax.f32 %v819, %v932
        %1028 = vmax.xlane.f32.xlu0 %v1027
        %v1029 = vpop.xlane.xlu0 %1028
        %v1030 = vmax.f32 %v822, %v935
        %1031 = vmax.xlane.f32.xlu0 %v1030
        %v1032 = vpop.xlane.xlu0 %1031
        %v1033 = vmax.f32 %v825, %v938
        %1034 = vmax.xlane.f32.xlu0 %v1033
        %v1035 = vpop.xlane.xlu0 %1034
        %v1036 = vmax.f32 %v828, %v941
        %1037 = vmax.xlane.f32.xlu0 %v1036
        %v1038 = vpop.xlane.xlu0 %1037
        %v1039 = vmax.f32 %v831, %v944
        %1040 = vmax.xlane.f32.xlu0 %v1039
        %v1041 = vpop.xlane.xlu0 %1040
        %v1042 = vmax.f32 %v834, %v947
        %1043 = vmax.xlane.f32.xlu0 %v1042
        %v1044 = vpop.xlane.xlu0 %1043
        %v1045 = vmax.f32 %v837, %v950
        %1046 = vmax.xlane.f32.xlu0 %v1045
        %v1047 = vpop.xlane.xlu0 %1046
        %v1048 = vmax.f32 %v840, %v953
        %1049 = vmax.xlane.f32.xlu0 %v1048
        %v1050 = vpop.xlane.xlu0 %1049
        %v1051 = vmax.f32 %v843, %v956
        %1052 = vmax.xlane.f32.xlu0 %v1051
        %v1053 = vpop.xlane.xlu0 %1052
        %v1054 = vmax.f32 %v846, %v959
        %1055 = vmax.xlane.f32.xlu0 %v1054
        %v1056 = vpop.xlane.xlu0 %1055
        %v1057 = vmax.f32 %v849, %v962
        %1058 = vmax.xlane.f32.xlu0 %v1057
        %v1059 = vpop.xlane.xlu0 %1058
        %v1060 = vmax.f32 %v852, %v965
        %1061 = vmax.xlane.f32.xlu0 %v1060
        %v1062 = vpop.xlane.xlu0 %1061
        %v1063 = vmax.f32 %v855, %v968
        %1064 = vmax.xlane.f32.xlu0 %v1063
        %v1065 = vpop.xlane.xlu0 %1064
        %v1066 = vmax.f32 %v858, %v971
        %1067 = vmax.xlane.f32.xlu0 %v1066
        %v1068 = vpop.xlane.xlu0 %1067
        %v1069 = vmax.f32 %v861, %v974
        %1070 = vmax.xlane.f32.xlu0 %v1069
        %v1071 = vpop.xlane.xlu0 %1070
        %v1072 = vmax.f32 %v864, %v977
        %1073 = vmax.xlane.f32.xlu0 %v1072
        %v1074 = vpop.xlane.xlu0 %1073
        %v1075 = vmax.f32 %v867, %v980
        %1076 = vmax.xlane.f32.xlu0 %v1075
        %v1077 = vpop.xlane.xlu0 %1076
        %v1078 = vmax.f32 %v870, %v983
        %1079 = vmax.xlane.f32.xlu0 %v1078
        %v1080 = vpop.xlane.xlu0 %1079
        %v1081 = vmax.f32 %v873, %v986
        %1082 = vmax.xlane.f32.xlu0 %v1081
        %v1083 = vpop.xlane.xlu0 %1082
        %v1084 = vmax.f32 %v876, %v989
        %1085 = vmax.xlane.f32.xlu0 %v1084
        %v1086 = vpop.xlane.xlu0 %1085
        %v1087 = vmax.f32 %v879, %v992
        %1088 = vmax.xlane.f32.xlu0 %v1087
        %v1089 = vpop.xlane.xlu0 %1088
        %v1090 = vmax.f32 %v882, %v995
        %1091 = vmax.xlane.f32.xlu0 %v1090
        %v1092 = vpop.xlane.xlu0 %1091
        %v1093 = vmax.f32 %v885, %v998
        %1094 = vmax.xlane.f32.xlu0 %v1093
        %v1095 = vpop.xlane.xlu0 %1094
        %v1096 = vmax.f32 %v888, %v1001
        %1097 = vmax.xlane.f32.xlu0 %v1096
        %v1098 = vpop.xlane.xlu0 %1097
        %v1099 = vsub.f32 %v795, %v1005
        %v1100 = vsub.f32 %v908, %v1005
        %v1101 = vsub.f32 %v798, %v1008
        %v1102 = vsub.f32 %v911, %v1008
        %v1103 = vsub.f32 %v801, %v1011
        %v1104 = vsub.f32 %v914, %v1011
        %v1105 = vsub.f32 %v804, %v1014
        %v1106 = vsub.f32 %v917, %v1014
        %v1107 = vsub.f32 %v807, %v1017
        %v1108 = vsub.f32 %v920, %v1017
        %v1109 = vsub.f32 %v810, %v1020
        %v1110 = vsub.f32 %v923, %v1020
        %v1111 = vsub.f32 %v813, %v1023
        %v1112 = vsub.f32 %v926, %v1023
        %v1113 = vsub.f32 %v816, %v1026
        %v1114 = vsub.f32 %v929, %v1026
        %v1115 = vsub.f32 %v819, %v1029
        %v1116 = vsub.f32 %v932, %v1029
        %v1117 = vsub.f32 %v822, %v1032
        %v1118 = vsub.f32 %v935, %v1032
        %v1119 = vsub.f32 %v825, %v1035
        %v1120 = vsub.f32 %v938, %v1035
        %v1121 = vsub.f32 %v828, %v1038
        %v1122 = vsub.f32 %v941, %v1038
        %v1123 = vsub.f32 %v831, %v1041
        %v1124 = vsub.f32 %v944, %v1041
        %v1125 = vsub.f32 %v834, %v1044
        %v1126 = vsub.f32 %v947, %v1044
        %v1127 = vsub.f32 %v837, %v1047
        %v1128 = vsub.f32 %v950, %v1047
        %v1129 = vsub.f32 %v840, %v1050
        %v1130 = vsub.f32 %v953, %v1050
        %v1131 = vsub.f32 %v843, %v1053
        %v1132 = vsub.f32 %v956, %v1053
        %v1133 = vsub.f32 %v846, %v1056
        %v1134 = vsub.f32 %v959, %v1056
        %v1135 = vsub.f32 %v849, %v1059
        %v1136 = vsub.f32 %v962, %v1059
        %v1137 = vsub.f32 %v852, %v1062
        %v1138 = vsub.f32 %v965, %v1062
        %v1139 = vsub.f32 %v855, %v1065
        %v1140 = vsub.f32 %v968, %v1065
        %v1141 = vsub.f32 %v858, %v1068
        %v1142 = vsub.f32 %v971, %v1068
        %v1143 = vsub.f32 %v861, %v1071
        %v1144 = vsub.f32 %v974, %v1071
        %v1145 = vsub.f32 %v864, %v1074
        %v1146 = vsub.f32 %v977, %v1074
        %v1147 = vsub.f32 %v867, %v1077
        %v1148 = vsub.f32 %v980, %v1077
        %v1149 = vsub.f32 %v870, %v1080
        %v1150 = vsub.f32 %v983, %v1080
        %v1151 = vsub.f32 %v873, %v1083
        %v1152 = vsub.f32 %v986, %v1083
        %v1153 = vsub.f32 %v876, %v1086
        %v1154 = vsub.f32 %v989, %v1086
        %v1155 = vsub.f32 %v879, %v1089
        %v1156 = vsub.f32 %v992, %v1089
        %v1157 = vsub.f32 %v882, %v1092
        %v1158 = vsub.f32 %v995, %v1092
        %v1159 = vsub.f32 %v885, %v1095
        %v1160 = vsub.f32 %v998, %v1095
        %v1161 = vsub.f32 %v888, %v1098
        %v1162 = vsub.f32 %v1001, %v1098
        %v1163 = vmul.f32 %v1099, 1.442695
        %v1164 = vpow.pop %v1163
        %v1165 = vmul.f32 %v1100, 1.442695
        %v1166 = vpow.pop %v1165
        %v1167 = vmul.f32 %v1101, 1.442695
        %v1168 = vpow.pop %v1167
        %v1169 = vmul.f32 %v1102, 1.442695
        %v1170 = vpow.pop %v1169
        %v1171 = vmul.f32 %v1103, 1.442695
        %v1172 = vpow.pop %v1171
        %v1173 = vmul.f32 %v1104, 1.442695
        %v1174 = vpow.pop %v1173
        %v1175 = vmul.f32 %v1105, 1.442695
        %v1176 = vpow.pop %v1175
        %v1177 = vmul.f32 %v1106, 1.442695
        %v1178 = vpow.pop %v1177
        %v1179 = vmul.f32 %v1107, 1.442695
        %v1180 = vpow.pop %v1179
        %v1181 = vmul.f32 %v1108, 1.442695
        %v1182 = vpow.pop %v1181
        %v1183 = vmul.f32 %v1109, 1.442695
        %v1184 = vpow.pop %v1183
        %v1185 = vmul.f32 %v1110, 1.442695
        %v1186 = vpow.pop %v1185
        %v1187 = vmul.f32 %v1111, 1.442695
        %v1188 = vpow.pop %v1187
        %v1189 = vmul.f32 %v1112, 1.442695
        %v1190 = vpow.pop %v1189
        %v1191 = vmul.f32 %v1113, 1.442695
        %v1192 = vpow.pop %v1191
        %v1193 = vmul.f32 %v1114, 1.442695
        %v1194 = vpow.pop %v1193
        %v1195 = vmul.f32 %v1115, 1.442695
        %v1196 = vpow.pop %v1195
        %v1197 = vmul.f32 %v1116, 1.442695
        %v1198 = vpow.pop %v1197
        %v1199 = vmul.f32 %v1117, 1.442695
        %v1200 = vpow.pop %v1199
        %v1201 = vmul.f32 %v1118, 1.442695
        %v1202 = vpow.pop %v1201
        %v1203 = vmul.f32 %v1119, 1.442695
        %v1204 = vpow.pop %v1203
        %v1205 = vmul.f32 %v1120, 1.442695
        %v1206 = vpow.pop %v1205
        %v1207 = vmul.f32 %v1121, 1.442695
        %v1208 = vpow.pop %v1207
        %v1209 = vmul.f32 %v1122, 1.442695
        %v1210 = vpow.pop %v1209
        %v1211 = vmul.f32 %v1123, 1.442695
        %v1212 = vpow.pop %v1211
        %v1213 = vmul.f32 %v1124, 1.442695
        %v1214 = vpow.pop %v1213
        %v1215 = vmul.f32 %v1125, 1.442695
        %v1216 = vpow.pop %v1215
        %v1217 = vmul.f32 %v1126, 1.442695
        %v1218 = vpow.pop %v1217
        %v1219 = vmul.f32 %v1127, 1.442695
        %v1220 = vpow.pop %v1219
        %v1221 = vmul.f32 %v1128, 1.442695
        %v1222 = vpow.pop %v1221
        %v1223 = vmul.f32 %v1129, 1.442695
        %v1224 = vpow.pop %v1223
        %v1225 = vmul.f32 %v1130, 1.442695
        %v1226 = vpow.pop %v1225
        %v1227 = vmul.f32 %v1131, 1.442695
        %v1228 = vpow.pop %v1227
        %v1229 = vmul.f32 %v1132, 1.442695
        %v1230 = vpow.pop %v1229
        %v1231 = vmul.f32 %v1133, 1.442695
        %v1232 = vpow.pop %v1231
        %v1233 = vmul.f32 %v1134, 1.442695
        %v1234 = vpow.pop %v1233
        %v1235 = vmul.f32 %v1135, 1.442695
        %v1236 = vpow.pop %v1235
        %v1237 = vmul.f32 %v1136, 1.442695
        %v1238 = vpow.pop %v1237
        %v1239 = vmul.f32 %v1137, 1.442695
        %v1240 = vpow.pop %v1239
        %v1241 = vmul.f32 %v1138, 1.442695
        %v1242 = vpow.pop %v1241
        %v1243 = vmul.f32 %v1139, 1.442695
        %v1244 = vpow.pop %v1243
        %v1245 = vmul.f32 %v1140, 1.442695
        %v1246 = vpow.pop %v1245
        %v1247 = vmul.f32 %v1141, 1.442695
        %v1248 = vpow.pop %v1247
        %v1249 = vmul.f32 %v1142, 1.442695
        %v1250 = vpow.pop %v1249
        %v1251 = vmul.f32 %v1143, 1.442695
        %v1252 = vpow.pop %v1251
        %v1253 = vmul.f32 %v1144, 1.442695
        %v1254 = vpow.pop %v1253
        %v1255 = vmul.f32 %v1145, 1.442695
        %v1256 = vpow.pop %v1255
        %v1257 = vmul.f32 %v1146, 1.442695
        %v1258 = vpow.pop %v1257
        %v1259 = vmul.f32 %v1147, 1.442695
        %v1260 = vpow.pop %v1259
        %v1261 = vmul.f32 %v1148, 1.442695
        %v1262 = vpow.pop %v1261
        %v1263 = vmul.f32 %v1149, 1.442695
        %v1264 = vpow.pop %v1263
        %v1265 = vmul.f32 %v1150, 1.442695
        %v1266 = vpow.pop %v1265
        %v1267 = vmul.f32 %v1151, 1.442695
        %v1268 = vpow.pop %v1267
        %v1269 = vmul.f32 %v1152, 1.442695
        %v1270 = vpow.pop %v1269
        %v1271 = vmul.f32 %v1153, 1.442695
        %v1272 = vpow.pop %v1271
        %v1273 = vmul.f32 %v1154, 1.442695
        %v1274 = vpow.pop %v1273
        %v1275 = vmul.f32 %v1155, 1.442695
        %v1276 = vpow.pop %v1275
        %v1277 = vmul.f32 %v1156, 1.442695
        %v1278 = vpow.pop %v1277
        %v1279 = vmul.f32 %v1157, 1.442695
        %v1280 = vpow.pop %v1279
        %v1281 = vmul.f32 %v1158, 1.442695
        %v1282 = vpow.pop %v1281
        %v1283 = vmul.f32 %v1159, 1.442695
        %v1284 = vpow.pop %v1283
        %v1285 = vmul.f32 %v1160, 1.442695
        %v1286 = vpow.pop %v1285
        %v1287 = vmul.f32 %v1161, 1.442695
        %v1288 = vpow.pop %v1287
        %v1289 = vmul.f32 %v1162, 1.442695
        %v1290 = vpow.pop %v1289
        %v1291 = vadd.f32 %v1164, %v1166
        %1292 = vadd.xlane.f32.xlu0 %v1291
        %v1293 = vpop.xlane.xlu0 %1292
        %v1294 = vadd.f32 %v1168, %v1170
        %1295 = vadd.xlane.f32.xlu0 %v1294
        %v1296 = vpop.xlane.xlu0 %1295
        %v1297 = vadd.f32 %v1172, %v1174
        %1298 = vadd.xlane.f32.xlu0 %v1297
        %v1299 = vpop.xlane.xlu0 %1298
        %v1300 = vadd.f32 %v1176, %v1178
        %1301 = vadd.xlane.f32.xlu0 %v1300
        %v1302 = vpop.xlane.xlu0 %1301
        %v1303 = vadd.f32 %v1180, %v1182
        %1304 = vadd.xlane.f32.xlu0 %v1303
        %v1305 = vpop.xlane.xlu0 %1304
        %v1306 = vadd.f32 %v1184, %v1186
        %1307 = vadd.xlane.f32.xlu0 %v1306
        %v1308 = vpop.xlane.xlu0 %1307
        %v1309 = vadd.f32 %v1188, %v1190
        %1310 = vadd.xlane.f32.xlu0 %v1309
        %v1311 = vpop.xlane.xlu0 %1310
        %v1312 = vadd.f32 %v1192, %v1194
        %1313 = vadd.xlane.f32.xlu0 %v1312
        %v1314 = vpop.xlane.xlu0 %1313
        %v1315 = vadd.f32 %v1196, %v1198
        %1316 = vadd.xlane.f32.xlu0 %v1315
        %v1317 = vpop.xlane.xlu0 %1316
        %v1318 = vadd.f32 %v1200, %v1202
        %1319 = vadd.xlane.f32.xlu0 %v1318
        %v1320 = vpop.xlane.xlu0 %1319
        %v1321 = vadd.f32 %v1204, %v1206
        %1322 = vadd.xlane.f32.xlu0 %v1321
        %v1323 = vpop.xlane.xlu0 %1322
        %v1324 = vadd.f32 %v1208, %v1210
        %1325 = vadd.xlane.f32.xlu0 %v1324
        %v1326 = vpop.xlane.xlu0 %1325
        %v1327 = vadd.f32 %v1212, %v1214
        %1328 = vadd.xlane.f32.xlu0 %v1327
        %v1329 = vpop.xlane.xlu0 %1328
        %v1330 = vadd.f32 %v1216, %v1218
        %1331 = vadd.xlane.f32.xlu0 %v1330
        %v1332 = vpop.xlane.xlu0 %1331
        %v1333 = vadd.f32 %v1220, %v1222
        %1334 = vadd.xlane.f32.xlu0 %v1333
        %v1335 = vpop.xlane.xlu0 %1334
        %v1336 = vadd.f32 %v1224, %v1226
        %1337 = vadd.xlane.f32.xlu0 %v1336
        %v1338 = vpop.xlane.xlu0 %1337
        %v1339 = vadd.f32 %v1228, %v1230
        %1340 = vadd.xlane.f32.xlu0 %v1339
        %v1341 = vpop.xlane.xlu0 %1340
        %v1342 = vadd.f32 %v1232, %v1234
        %1343 = vadd.xlane.f32.xlu0 %v1342
        %v1344 = vpop.xlane.xlu0 %1343
        %v1345 = vadd.f32 %v1236, %v1238
        %1346 = vadd.xlane.f32.xlu0 %v1345
        %v1347 = vpop.xlane.xlu0 %1346
        %v1348 = vadd.f32 %v1240, %v1242
        %1349 = vadd.xlane.f32.xlu0 %v1348
        %v1350 = vpop.xlane.xlu0 %1349
        %v1351 = vadd.f32 %v1244, %v1246
        %1352 = vadd.xlane.f32.xlu0 %v1351
        %v1353 = vpop.xlane.xlu0 %1352
        %v1354 = vadd.f32 %v1248, %v1250
        %1355 = vadd.xlane.f32.xlu0 %v1354
        %v1356 = vpop.xlane.xlu0 %1355
        %v1357 = vadd.f32 %v1252, %v1254
        %1358 = vadd.xlane.f32.xlu0 %v1357
        %v1359 = vpop.xlane.xlu0 %1358
        %v1360 = vadd.f32 %v1256, %v1258
        %1361 = vadd.xlane.f32.xlu0 %v1360
        %v1362 = vpop.xlane.xlu0 %1361
        %v1363 = vadd.f32 %v1260, %v1262
        %1364 = vadd.xlane.f32.xlu0 %v1363
        %v1365 = vpop.xlane.xlu0 %1364
        %v1366 = vadd.f32 %v1264, %v1266
        %1367 = vadd.xlane.f32.xlu0 %v1366
        %v1368 = vpop.xlane.xlu0 %1367
        %v1369 = vadd.f32 %v1268, %v1270
        %1370 = vadd.xlane.f32.xlu0 %v1369
        %v1371 = vpop.xlane.xlu0 %1370
        %v1372 = vadd.f32 %v1272, %v1274
        %1373 = vadd.xlane.f32.xlu0 %v1372
        %v1374 = vpop.xlane.xlu0 %1373
        %v1375 = vadd.f32 %v1276, %v1278
        %1376 = vadd.xlane.f32.xlu0 %v1375
        %v1377 = vpop.xlane.xlu0 %1376
        %v1378 = vadd.f32 %v1280, %v1282
        %1379 = vadd.xlane.f32.xlu0 %v1378
        %v1380 = vpop.xlane.xlu0 %1379
        %v1381 = vadd.f32 %v1284, %v1286
        %1382 = vadd.xlane.f32.xlu0 %v1381
        %v1383 = vpop.xlane.xlu0 %1382
        %v1384 = vadd.f32 %v1288, %v1290
        %1385 = vadd.xlane.f32.xlu0 %v1384
        %v1386 = vpop.xlane.xlu0 %1385
        %v1387 = vrcp.pop %v1293
        %v1388 = vrcp.pop %v1296
        %v1389 = vrcp.pop %v1299
        %v1390 = vrcp.pop %v1302
        %v1391 = vrcp.pop %v1305
        %v1392 = vrcp.pop %v1308
        %v1393 = vrcp.pop %v1311
        %v1394 = vrcp.pop %v1314
        %v1395 = vrcp.pop %v1317
        %v1396 = vrcp.pop %v1320
        %v1397 = vrcp.pop %v1323
        %v1398 = vrcp.pop %v1326
        %v1399 = vrcp.pop %v1329
        %v1400 = vrcp.pop %v1332
        %v1401 = vrcp.pop %v1335
        %v1402 = vrcp.pop %v1338
        %v1403 = vrcp.pop %v1341
        %v1404 = vrcp.pop %v1344
        %v1405 = vrcp.pop %v1347
        %v1406 = vrcp.pop %v1350
        %v1407 = vrcp.pop %v1353
        %v1408 = vrcp.pop %v1356
        %v1409 = vrcp.pop %v1359
        %v1410 = vrcp.pop %v1362
        %v1411 = vrcp.pop %v1365
        %v1412 = vrcp.pop %v1368
        %v1413 = vrcp.pop %v1371
        %v1414 = vrcp.pop %v1374
        %v1415 = vrcp.pop %v1377
        %v1416 = vrcp.pop %v1380
        %v1417 = vrcp.pop %v1383
        %v1418 = vrcp.pop %v1386
        %v1419 = vmul.f32 %v1164, %v1387
        %v1420 = vmul.f32 %v1166, %v1387
        %v1421 = vmul.f32 %v1168, %v1388
        %v1422 = vmul.f32 %v1170, %v1388
        %v1423 = vmul.f32 %v1172, %v1389
        %v1424 = vmul.f32 %v1174, %v1389
        %v1425 = vmul.f32 %v1176, %v1390
        %v1426 = vmul.f32 %v1178, %v1390
        %v1427 = vmul.f32 %v1180, %v1391
        %v1428 = vmul.f32 %v1182, %v1391
        %v1429 = vmul.f32 %v1184, %v1392
        %v1430 = vmul.f32 %v1186, %v1392
        %v1431 = vmul.f32 %v1188, %v1393
        %v1432 = vmul.f32 %v1190, %v1393
        %v1433 = vmul.f32 %v1192, %v1394
        %v1434 = vmul.f32 %v1194, %v1394
        %v1435 = vmul.f32 %v1196, %v1395
        %v1436 = vmul.f32 %v1198, %v1395
        %v1437 = vmul.f32 %v1200, %v1396
        %v1438 = vmul.f32 %v1202, %v1396
        %v1439 = vmul.f32 %v1204, %v1397
        %v1440 = vmul.f32 %v1206, %v1397
        %v1441 = vmul.f32 %v1208, %v1398
        %v1442 = vmul.f32 %v1210, %v1398
        %v1443 = vmul.f32 %v1212, %v1399
        %v1444 = vmul.f32 %v1214, %v1399
        %v1445 = vmul.f32 %v1216, %v1400
        %v1446 = vmul.f32 %v1218, %v1400
        %v1447 = vmul.f32 %v1220, %v1401
        %v1448 = vmul.f32 %v1222, %v1401
        %v1449 = vmul.f32 %v1224, %v1402
        %v1450 = vmul.f32 %v1226, %v1402
        %v1451 = vmul.f32 %v1228, %v1403
        %v1452 = vmul.f32 %v1230, %v1403
        %v1453 = vmul.f32 %v1232, %v1404
        %v1454 = vmul.f32 %v1234, %v1404
        %v1455 = vmul.f32 %v1236, %v1405
        %v1456 = vmul.f32 %v1238, %v1405
        %v1457 = vmul.f32 %v1240, %v1406
        %v1458 = vmul.f32 %v1242, %v1406
        %v1459 = vmul.f32 %v1244, %v1407
        %v1460 = vmul.f32 %v1246, %v1407
        %v1461 = vmul.f32 %v1248, %v1408
        %v1462 = vmul.f32 %v1250, %v1408
        %v1463 = vmul.f32 %v1252, %v1409
        %v1464 = vmul.f32 %v1254, %v1409
        %v1465 = vmul.f32 %v1256, %v1410
        %v1466 = vmul.f32 %v1258, %v1410
        %v1467 = vmul.f32 %v1260, %v1411
        %v1468 = vmul.f32 %v1262, %v1411
        %v1469 = vmul.f32 %v1264, %v1412
        %v1470 = vmul.f32 %v1266, %v1412
        %v1471 = vmul.f32 %v1268, %v1413
        %v1472 = vmul.f32 %v1270, %v1413
        %v1473 = vmul.f32 %v1272, %v1414
        %v1474 = vmul.f32 %v1274, %v1414
        %v1475 = vmul.f32 %v1276, %v1415
        %v1476 = vmul.f32 %v1278, %v1415
        %v1477 = vmul.f32 %v1280, %v1416
        %v1478 = vmul.f32 %v1282, %v1416
        %v1479 = vmul.f32 %v1284, %v1417
        %v1480 = vmul.f32 %v1286, %v1417
        %v1481 = vmul.f32 %v1288, %v1418
        %v1482 = vmul.f32 %v1290, %v1418
        %1483 = vrot.lane.b32.xlu0 %v457, 120
        %v1484 = vpop.permute.xlu0 %1483
        %1485 = vrot.lane.b32.xlu0 %v460, 120
        %v1486 = vpop.permute.xlu0 %1485
        %1487 = vrot.lane.b32.xlu0 %v463, 120
        %v1488 = vpop.permute.xlu0 %1487
        %1489 = vrot.lane.b32.xlu0 %v466, 120
        %v1490 = vpop.permute.xlu0 %1489
        %1491 = vrot.lane.b32.xlu0 %v469, 120
        %v1492 = vpop.permute.xlu0 %1491
        %1493 = vrot.lane.b32.xlu0 %v472, 120
        %v1494 = vpop.permute.xlu0 %1493
        %1495 = vrot.lane.b32.xlu0 %v475, 120
        %v1496 = vpop.permute.xlu0 %1495
        %1497 = vrot.lane.b32.xlu0 %v478, 120
        %v1498 = vpop.permute.xlu0 %1497
        %1499 = vrot.lane.b32.xlu0 %v481, 120
        %v1500 = vpop.permute.xlu0 %1499
        %1501 = vrot.lane.b32.xlu0 %v484, 120
        %v1502 = vpop.permute.xlu0 %1501
        %1503 = vrot.lane.b32.xlu0 %v487, 120
        %v1504 = vpop.permute.xlu0 %1503
        %1505 = vrot.lane.b32.xlu0 %v490, 120
        %v1506 = vpop.permute.xlu0 %1505
        %1507 = vrot.lane.b32.xlu0 %v493, 120
        %v1508 = vpop.permute.xlu0 %1507
        %1509 = vrot.lane.b32.xlu0 %v496, 120
        %v1510 = vpop.permute.xlu0 %1509
        %1511 = vrot.lane.b32.xlu0 %v499, 120
        %v1512 = vpop.permute.xlu0 %1511
        %1513 = vrot.lane.b32.xlu0 %v502, 120
        %v1514 = vpop.permute.xlu0 %1513
        %1515 = vrot.lane.b32.xlu0 %v505, 120
        %v1516 = vpop.permute.xlu0 %1515
        %1517 = vrot.lane.b32.xlu0 %v508, 120
        %v1518 = vpop.permute.xlu0 %1517
        %1519 = vrot.lane.b32.xlu0 %v511, 120
        %v1520 = vpop.permute.xlu0 %1519
        %1521 = vrot.lane.b32.xlu0 %v514, 120
        %v1522 = vpop.permute.xlu0 %1521
        %1523 = vrot.lane.b32.xlu0 %v517, 120
        %v1524 = vpop.permute.xlu0 %1523
        %1525 = vrot.lane.b32.xlu0 %v520, 120
        %v1526 = vpop.permute.xlu0 %1525
        %1527 = vrot.lane.b32.xlu0 %v523, 120
        %v1528 = vpop.permute.xlu0 %1527
        %1529 = vrot.lane.b32.xlu0 %v526, 120
        %v1530 = vpop.permute.xlu0 %1529
        %1531 = vrot.lane.b32.xlu0 %v529, 120
        %v1532 = vpop.permute.xlu0 %1531
        %1533 = vrot.lane.b32.xlu0 %v532, 120
        %v1534 = vpop.permute.xlu0 %1533
        %1535 = vrot.lane.b32.xlu0 %v535, 120
        %v1536 = vpop.permute.xlu0 %1535
        %1537 = vrot.lane.b32.xlu0 %v538, 120
        %v1538 = vpop.permute.xlu0 %1537
        %1539 = vrot.lane.b32.xlu0 %v541, 120
        %v1540 = vpop.permute.xlu0 %1539
        %1541 = vrot.lane.b32.xlu0 %v544, 120
        %v1542 = vpop.permute.xlu0 %1541
        %1543 = vrot.lane.b32.xlu0 %v547, 120
        %v1544 = vpop.permute.xlu0 %1543
        %1545 = vrot.lane.b32.xlu0 %v550, 120
        %v1546 = vpop.permute.xlu0 %1545
        %1579 = vmatpush.msra.mxu0 %v1514
        %1580 = vmatpush.msra.mxu0 %v1512
        %1581 = vmatpush.msra.mxu0 %v1510
        %1582 = vmatpush.msra.mxu0 %v1508
        %1583 = vmatpush.msra.mxu0 %v1506
        %1584 = vmatpush.msra.mxu0 %v1504
        %1585 = vmatpush.msra.mxu0 %v1502
        %1586 = vmatpush.msra.mxu0 %v1500
        %1587 = vmatpush.msra.mxu0 %v1498
        %1588 = vmatpush.msra.mxu0 %v1496
        %1589 = vmatpush.msra.mxu0 %v1494
        %1590 = vmatpush.msra.mxu0 %v1492
        %1591 = vmatpush.msra.mxu0 %v1490
        %1592 = vmatpush.msra.mxu0 %v1488
        %1593 = vmatpush.msra.mxu0 %v1486
        %1594 = vmatpush.msra.mxu0 %v1484
        %1595 = vmatmul.f32.gmra.mxu0 %v1419
        %v1596 = vpop.f32.mrf.mxu0
        %v1597 = vadd.f32 0.0, %v1596
        %1598 = vmatmul.f32.gmra.mxu0 %v1421
        %v1599 = vpop.f32.mrf.mxu0
        %v1600 = vadd.f32 0.0, %v1599
        %1601 = vmatmul.f32.gmra.mxu0 %v1423
        %v1602 = vpop.f32.mrf.mxu0
        %v1603 = vadd.f32 0.0, %v1602
        %1604 = vmatmul.f32.gmra.mxu0 %v1425
        %v1605 = vpop.f32.mrf.mxu0
        %v1606 = vadd.f32 0.0, %v1605
        %1607 = vmatmul.f32.gmra.mxu0 %v1427
        %v1608 = vpop.f32.mrf.mxu0
        %v1609 = vadd.f32 0.0, %v1608
        %1610 = vmatmul.f32.gmra.mxu0 %v1429
        %v1611 = vpop.f32.mrf.mxu0
        %v1612 = vadd.f32 0.0, %v1611
        %1613 = vmatmul.f32.gmra.mxu0 %v1431
        %v1614 = vpop.f32.mrf.mxu0
        %v1615 = vadd.f32 0.0, %v1614
        %1616 = vmatmul.f32.gmra.mxu0 %v1433
        %v1617 = vpop.f32.mrf.mxu0
        %v1618 = vadd.f32 0.0, %v1617
        %1619 = vmatmul.f32.gmra.mxu0 %v1435
        %v1620 = vpop.f32.mrf.mxu0
        %v1621 = vadd.f32 0.0, %v1620
        %1622 = vmatmul.f32.gmra.mxu0 %v1437
        %v1623 = vpop.f32.mrf.mxu0
        %v1624 = vadd.f32 0.0, %v1623
        %1625 = vmatmul.f32.gmra.mxu0 %v1439
        %v1626 = vpop.f32.mrf.mxu0
        %v1627 = vadd.f32 0.0, %v1626
        %1628 = vmatmul.f32.gmra.mxu0 %v1441
        %v1629 = vpop.f32.mrf.mxu0
        %v1630 = vadd.f32 0.0, %v1629
        %1631 = vmatmul.f32.gmra.mxu0 %v1443
        %v1632 = vpop.f32.mrf.mxu0
        %v1633 = vadd.f32 0.0, %v1632
        %1634 = vmatmul.f32.gmra.mxu0 %v1445
        %v1635 = vpop.f32.mrf.mxu0
        %v1636 = vadd.f32 0.0, %v1635
        %1637 = vmatmul.f32.gmra.mxu0 %v1447
        %v1638 = vpop.f32.mrf.mxu0
        %v1639 = vadd.f32 0.0, %v1638
        %1640 = vmatmul.f32.gmra.mxu0 %v1449
        %v1641 = vpop.f32.mrf.mxu0
        %v1642 = vadd.f32 0.0, %v1641
        %1643 = vmatmul.f32.gmra.mxu0 %v1451
        %v1644 = vpop.f32.mrf.mxu0
        %v1645 = vadd.f32 0.0, %v1644
        %1646 = vmatmul.f32.gmra.mxu0 %v1453
        %v1647 = vpop.f32.mrf.mxu0
        %v1648 = vadd.f32 0.0, %v1647
        %1649 = vmatmul.f32.gmra.mxu0 %v1455
        %v1650 = vpop.f32.mrf.mxu0
        %v1651 = vadd.f32 0.0, %v1650
        %1652 = vmatmul.f32.gmra.mxu0 %v1457
        %v1653 = vpop.f32.mrf.mxu0
        %v1654 = vadd.f32 0.0, %v1653
        %1655 = vmatmul.f32.gmra.mxu0 %v1459
        %v1656 = vpop.f32.mrf.mxu0
        %v1657 = vadd.f32 0.0, %v1656
        %1658 = vmatmul.f32.gmra.mxu0 %v1461
        %v1659 = vpop.f32.mrf.mxu0
        %v1660 = vadd.f32 0.0, %v1659
        %1661 = vmatmul.f32.gmra.mxu0 %v1463
        %v1662 = vpop.f32.mrf.mxu0
        %v1663 = vadd.f32 0.0, %v1662
        %1664 = vmatmul.f32.gmra.mxu0 %v1465
        %v1665 = vpop.f32.mrf.mxu0
        %v1666 = vadd.f32 0.0, %v1665
        %1667 = vmatmul.f32.gmra.mxu0 %v1467
        %v1668 = vpop.f32.mrf.mxu0
        %v1669 = vadd.f32 0.0, %v1668
        %1670 = vmatmul.f32.gmra.mxu0 %v1469
        %v1671 = vpop.f32.mrf.mxu0
        %v1672 = vadd.f32 0.0, %v1671
        %1673 = vmatmul.f32.gmra.mxu0 %v1471
        %v1674 = vpop.f32.mrf.mxu0
        %v1675 = vadd.f32 0.0, %v1674
        %1676 = vmatmul.f32.gmra.mxu0 %v1473
        %v1677 = vpop.f32.mrf.mxu0
        %v1678 = vadd.f32 0.0, %v1677
        %1679 = vmatmul.f32.gmra.mxu0 %v1475
        %v1680 = vpop.f32.mrf.mxu0
        %v1681 = vadd.f32 0.0, %v1680
        %1682 = vmatmul.f32.gmra.mxu0 %v1477
        %v1683 = vpop.f32.mrf.mxu0
        %v1684 = vadd.f32 0.0, %v1683
        %1685 = vmatmul.f32.gmra.mxu0 %v1479
        %v1686 = vpop.f32.mrf.mxu0
        %v1687 = vadd.f32 0.0, %v1686
        %1688 = vmatmul.f32.gmra.mxu0 %v1481
        %v1689 = vpop.f32.mrf.mxu0
        %v1690 = vadd.f32 0.0, %v1689
        %1691 = vdwg.mxu0
        %1692 = vmatpush.msra.mxu0 %v1546
        %1693 = vmatpush.msra.mxu0 %v1544
        %1694 = vmatpush.msra.mxu0 %v1542
        %1695 = vmatpush.msra.mxu0 %v1540
        %1696 = vmatpush.msra.mxu0 %v1538
        %1697 = vmatpush.msra.mxu0 %v1536
        %1698 = vmatpush.msra.mxu0 %v1534
        %1699 = vmatpush.msra.mxu0 %v1532
        %1700 = vmatpush.msra.mxu0 %v1530
        %1701 = vmatpush.msra.mxu0 %v1528
        %1702 = vmatpush.msra.mxu0 %v1526
        %1703 = vmatpush.msra.mxu0 %v1524
        %1704 = vmatpush.msra.mxu0 %v1522
        %1705 = vmatpush.msra.mxu0 %v1520
        %1706 = vmatpush.msra.mxu0 %v1518
        %1707 = vmatpush.msra.mxu0 %v1516
        %1708 = vmatmul.f32.gmra.mxu0 %v1420
        %v1709 = vpop.f32.mrf.mxu0
        %v1710 = vadd.f32 %v1597, %v1709
        %1711 = vmatmul.f32.gmra.mxu0 %v1422
        %v1712 = vpop.f32.mrf.mxu0
        %v1713 = vadd.f32 %v1600, %v1712
        %1714 = vmatmul.f32.gmra.mxu0 %v1424
        %v1715 = vpop.f32.mrf.mxu0
        %v1716 = vadd.f32 %v1603, %v1715
        %1717 = vmatmul.f32.gmra.mxu0 %v1426
        %v1718 = vpop.f32.mrf.mxu0
        %v1719 = vadd.f32 %v1606, %v1718
        %1720 = vmatmul.f32.gmra.mxu0 %v1428
        %v1721 = vpop.f32.mrf.mxu0
        %v1722 = vadd.f32 %v1609, %v1721
        %1723 = vmatmul.f32.gmra.mxu0 %v1430
        %v1724 = vpop.f32.mrf.mxu0
        %v1725 = vadd.f32 %v1612, %v1724
        %1726 = vmatmul.f32.gmra.mxu0 %v1432
        %v1727 = vpop.f32.mrf.mxu0
        %v1728 = vadd.f32 %v1615, %v1727
        %1729 = vmatmul.f32.gmra.mxu0 %v1434
        %v1730 = vpop.f32.mrf.mxu0
        %v1731 = vadd.f32 %v1618, %v1730
        %1732 = vmatmul.f32.gmra.mxu0 %v1436
        %v1733 = vpop.f32.mrf.mxu0
        %v1734 = vadd.f32 %v1621, %v1733
        %1735 = vmatmul.f32.gmra.mxu0 %v1438
        %v1736 = vpop.f32.mrf.mxu0
        %v1737 = vadd.f32 %v1624, %v1736
        %1738 = vmatmul.f32.gmra.mxu0 %v1440
        %v1739 = vpop.f32.mrf.mxu0
        %v1740 = vadd.f32 %v1627, %v1739
        %1741 = vmatmul.f32.gmra.mxu0 %v1442
        %v1742 = vpop.f32.mrf.mxu0
        %v1743 = vadd.f32 %v1630, %v1742
        %1744 = vmatmul.f32.gmra.mxu0 %v1444
        %v1745 = vpop.f32.mrf.mxu0
        %v1746 = vadd.f32 %v1633, %v1745
        %1747 = vmatmul.f32.gmra.mxu0 %v1446
        %v1748 = vpop.f32.mrf.mxu0
        %v1749 = vadd.f32 %v1636, %v1748
        %1750 = vmatmul.f32.gmra.mxu0 %v1448
        %v1751 = vpop.f32.mrf.mxu0
        %v1752 = vadd.f32 %v1639, %v1751
        %1753 = vmatmul.f32.gmra.mxu0 %v1450
        %v1754 = vpop.f32.mrf.mxu0
        %v1755 = vadd.f32 %v1642, %v1754
        %1756 = vmatmul.f32.gmra.mxu0 %v1452
        %v1757 = vpop.f32.mrf.mxu0
        %v1758 = vadd.f32 %v1645, %v1757
        %1759 = vmatmul.f32.gmra.mxu0 %v1454
        %v1760 = vpop.f32.mrf.mxu0
        %v1761 = vadd.f32 %v1648, %v1760
        %1762 = vmatmul.f32.gmra.mxu0 %v1456
        %v1763 = vpop.f32.mrf.mxu0
        %v1764 = vadd.f32 %v1651, %v1763
        %1765 = vmatmul.f32.gmra.mxu0 %v1458
        %v1766 = vpop.f32.mrf.mxu0
        %v1767 = vadd.f32 %v1654, %v1766
        %1768 = vmatmul.f32.gmra.mxu0 %v1460
        %v1769 = vpop.f32.mrf.mxu0
        %v1770 = vadd.f32 %v1657, %v1769
        %1771 = vmatmul.f32.gmra.mxu0 %v1462
        %v1772 = vpop.f32.mrf.mxu0
        %v1773 = vadd.f32 %v1660, %v1772
        %1774 = vmatmul.f32.gmra.mxu0 %v1464
        %v1775 = vpop.f32.mrf.mxu0
        %v1776 = vadd.f32 %v1663, %v1775
        %1777 = vmatmul.f32.gmra.mxu0 %v1466
        %v1778 = vpop.f32.mrf.mxu0
        %v1779 = vadd.f32 %v1666, %v1778
        %1780 = vmatmul.f32.gmra.mxu0 %v1468
        %v1781 = vpop.f32.mrf.mxu0
        %v1782 = vadd.f32 %v1669, %v1781
        %1783 = vmatmul.f32.gmra.mxu0 %v1470
        %v1784 = vpop.f32.mrf.mxu0
        %v1785 = vadd.f32 %v1672, %v1784
        %1786 = vmatmul.f32.gmra.mxu0 %v1472
        %v1787 = vpop.f32.mrf.mxu0
        %v1788 = vadd.f32 %v1675, %v1787
        %1789 = vmatmul.f32.gmra.mxu0 %v1474
        %v1790 = vpop.f32.mrf.mxu0
        %v1791 = vadd.f32 %v1678, %v1790
        %1792 = vmatmul.f32.gmra.mxu0 %v1476
        %v1793 = vpop.f32.mrf.mxu0
        %v1794 = vadd.f32 %v1681, %v1793
        %1795 = vmatmul.f32.gmra.mxu0 %v1478
        %v1796 = vpop.f32.mrf.mxu0
        %v1797 = vadd.f32 %v1684, %v1796
        %1798 = vmatmul.f32.gmra.mxu0 %v1480
        %v1799 = vpop.f32.mrf.mxu0
        %v1800 = vadd.f32 %v1687, %v1799
        %1801 = vmatmul.f32.gmra.mxu0 %v1482
        %v1802 = vpop.f32.mrf.mxu0
        %v1803 = vadd.f32 %v1690, %v1802
        %1804 = vdwg.mxu0
        %v1805 = vld [vmem:[#allocation5] sm:$0xff]
        %v1806 = vld [vmem:[#allocation5 + $0x8] sm:$0xff]
        %v1807 = vld [vmem:[#allocation5 + $0x10] sm:$0xff]
        %v1808 = vld [vmem:[#allocation5 + $0x18] sm:$0xff]
        %v1810 = vsel %vm342, %v1805, 0
        %v1813 = vsel %vm342, %v1806, 0
        %v1816 = vsel %vm342, %v1807, 0
        %v1819 = vsel %vm342, %v1808, 0
        %v1822 = vsel %vm342, %v1710, 0
        %v1825 = vsel %vm342, %v1713, 0
        %v1828 = vsel %vm342, %v1716, 0
        %v1831 = vsel %vm342, %v1719, 0
        %v1834 = vsel %vm342, %v1722, 0
        %v1837 = vsel %vm342, %v1725, 0
        %v1840 = vsel %vm342, %v1728, 0
        %v1843 = vsel %vm342, %v1731, 0
        %v1846 = vsel %vm342, %v1734, 0
        %v1849 = vsel %vm342, %v1737, 0
        %v1852 = vsel %vm342, %v1740, 0
        %v1855 = vsel %vm342, %v1743, 0
        %v1858 = vsel %vm342, %v1746, 0
        %v1861 = vsel %vm342, %v1749, 0
        %v1864 = vsel %vm342, %v1752, 0
        %v1867 = vsel %vm342, %v1755, 0
        %v1870 = vsel %vm342, %v1758, 0
        %v1873 = vsel %vm342, %v1761, 0
        %v1876 = vsel %vm342, %v1764, 0
        %v1879 = vsel %vm342, %v1767, 0
        %v1882 = vsel %vm342, %v1770, 0
        %v1885 = vsel %vm342, %v1773, 0
        %v1888 = vsel %vm342, %v1776, 0
        %v1891 = vsel %vm342, %v1779, 0
        %v1894 = vsel %vm342, %v1782, 0
        %v1897 = vsel %vm342, %v1785, 0
        %v1900 = vsel %vm342, %v1788, 0
        %v1903 = vsel %vm342, %v1791, 0
        %v1906 = vsel %vm342, %v1794, 0
        %v1909 = vsel %vm342, %v1797, 0
        %v1912 = vsel %vm342, %v1800, 0
        %v1915 = vsel %vm342, %v1803, 0
        %1917 = vmatpush.xpose.msra.mxu0 %v1867
        %1918 = vmatpush.xpose.msra.mxu0 %v1864
        %1919 = vmatpush.xpose.msra.mxu0 %v1861
        %1920 = vmatpush.xpose.msra.mxu0 %v1858
        %1921 = vmatpush.xpose.msra.mxu0 %v1855
        %1922 = vmatpush.xpose.msra.mxu0 %v1852
        %1923 = vmatpush.xpose.msra.mxu0 %v1849
        %1924 = vmatpush.xpose.msra.mxu0 %v1846
        %1925 = vmatpush.xpose.msra.mxu0 %v1843
        %1926 = vmatpush.xpose.msra.mxu0 %v1840
        %1927 = vmatpush.xpose.msra.mxu0 %v1837
        %1928 = vmatpush.xpose.msra.mxu0 %v1834
        %1929 = vmatpush.xpose.msra.mxu0 %v1831
        %1930 = vmatpush.xpose.msra.mxu0 %v1828
        %1931 = vmatpush.xpose.msra.mxu0 %v1825
        %1932 = vmatpush.xpose.msra.mxu0 %v1822
        %1933 = vmatmul.f32.gmra.mxu0 %v1810
        %v1934 = vpop.f32.mrf.mxu0
        %v1935 = vadd.f32 0.0, %v1934
        %1936 = vmatmul.f32.gmra.mxu0 %v1813
        %v1937 = vpop.f32.mrf.mxu0
        %v1938 = vadd.f32 0.0, %v1937
        %1939 = vmatmul.f32.gmra.mxu0 %v1816
        %v1940 = vpop.f32.mrf.mxu0
        %v1941 = vadd.f32 0.0, %v1940
        %1942 = vmatmul.f32.gmra.mxu0 %v1819
        %v1943 = vpop.f32.mrf.mxu0
        %v1944 = vadd.f32 0.0, %v1943
        %1945 = vdwg.mxu0
        %1946 = vmatpush.xpose.msra.mxu0 %v1915
        %1947 = vmatpush.xpose.msra.mxu0 %v1912
        %1948 = vmatpush.xpose.msra.mxu0 %v1909
        %1949 = vmatpush.xpose.msra.mxu0 %v1906
        %1950 = vmatpush.xpose.msra.mxu0 %v1903
        %1951 = vmatpush.xpose.msra.mxu0 %v1900
        %1952 = vmatpush.xpose.msra.mxu0 %v1897
        %1953 = vmatpush.xpose.msra.mxu0 %v1894
        %1954 = vmatpush.xpose.msra.mxu0 %v1891
        %1955 = vmatpush.xpose.msra.mxu0 %v1888
        %1956 = vmatpush.xpose.msra.mxu0 %v1885
        %1957 = vmatpush.xpose.msra.mxu0 %v1882
        %1958 = vmatpush.xpose.msra.mxu0 %v1879
        %1959 = vmatpush.xpose.msra.mxu0 %v1876
        %1960 = vmatpush.xpose.msra.mxu0 %v1873
        %1961 = vmatpush.xpose.msra.mxu0 %v1870
        %1962 = vmatmul.f32.gmra.mxu0 %v1810
        %v1963 = vpop.f32.mrf.mxu0
        %v1964 = vadd.f32 0.0, %v1963
        %1965 = vmatmul.f32.gmra.mxu0 %v1813
        %v1966 = vpop.f32.mrf.mxu0
        %v1967 = vadd.f32 0.0, %v1966
        %1968 = vmatmul.f32.gmra.mxu0 %v1816
        %v1969 = vpop.f32.mrf.mxu0
        %v1970 = vadd.f32 0.0, %v1969
        %1971 = vmatmul.f32.gmra.mxu0 %v1819
        %v1972 = vpop.f32.mrf.mxu0
        %v1973 = vadd.f32 0.0, %v1972
        %1974 = vdwg.mxu0
        %v1975 = vadd.f32 %v262, %v1935
        %v1976 = vadd.f32 %v263, %v1964
        %v1977 = vadd.f32 %v264, %v1938
        %v1978 = vadd.f32 %v265, %v1967
        %v1979 = vadd.f32 %v266, %v1941
        %v1980 = vadd.f32 %v267, %v1970
        %v1981 = vadd.f32 %v268, %v1944
        %v1982 = vadd.f32 %v269, %v1973
        %v1983 = vld [vmem:[%s4] sm:$0xff]
        %v1984 = vld [vmem:[%s4 + $0x8] sm:$0xff]
        %v1985 = vld [vmem:[%s4 + $0x10] sm:$0xff]
        %v1986 = vld [vmem:[%s4 + $0x18] sm:$0xff]
        %1988 = vset.pattern.permute.xlu0 0
        %1989 = vperm.xlu0 %1988, %v1983
        %v1990 = vpop.permute.xlu0 %1989
        %1993 = vset.pattern.permute.xlu0 0
        %1994 = vperm.xlu0 %1993, %v1984
        %v1995 = vpop.permute.xlu0 %1994
        %1998 = vset.pattern.permute.xlu0 0
        %1999 = vperm.xlu0 %1998, %v1985
        %v2000 = vpop.permute.xlu0 %1999
        %2003 = vset.pattern.permute.xlu0 0
        %2004 = vperm.xlu0 %2003, %v1986
        %v2005 = vpop.permute.xlu0 %2004
        %v2007 = vadd.f32 %v1975, %v1990
        %v2008 = vadd.f32 %v1976, %v1990
        %v2009 = vadd.f32 %v1977, %v1995
        %v2010 = vadd.f32 %v1978, %v1995
        %v2011 = vadd.f32 %v1979, %v2000
        %v2012 = vadd.f32 %v1980, %v2000
        %v2013 = vadd.f32 %v1981, %v2005
        %v2014 = vadd.f32 %v1982, %v2005
        %2015 = vst [vmem:[%s261] sm:$0xff] %v2007
        %2016 = vst [vmem:[%s261 + $0x8] sm:$0xff] %v2008
        %2017 = vst [vmem:[%s261 + $0x10] sm:$0xff] %v2009
        %2018 = vst [vmem:[%s261 + $0x18] sm:$0xff] %v2010
        %2019 = vst [vmem:[%s261 + $0x20] sm:$0xff] %v2011
        %2020 = vst [vmem:[%s261 + $0x28] sm:$0xff] %v2012
        %2021 = vst [vmem:[%s261 + $0x30] sm:$0xff] %v2013
        %2022 = vst [vmem:[%s261 + $0x38] sm:$0xff] %v2014
        %s2023 = sand.u32 %s141, 1
        %s2024 = scalar_lea.sflag [#allocation4], %s2023
        %s2025 = sand.u32 %s141, 1
        %s2026 = smul.addr %s2025, 64
        %s2027 = scalar_lea.vmem [#allocation7], %s2026
        // Predicated region
        $region49: #{tpu_custom_call.1} parent=39 // pred_check
          %p2028 = pneg %p151
        $region50: #{tpu_custom_call.1} parent=39 // pred_check_branch
          %2030 = sbr.rel (%p2028) target = $region52
        $region51: #{tpu_custom_call.1} parent=39 // pred_region
          %2032 = vsyncadd %s2024, 0
          %s2033 = smul.addr %s23, 8
          %s2034 = smul.addr %s2033, 8
          %s2035 = scalar_lea.hbm %s5, %s2034
          %s2036 = sshll.u32 %s2027, 4
          %s2037 = int_to_ptr.vmem [resolvable:$true] %s2036
          %s2038 = sshll.u32 %s2035, 4
          %s2039 = int_to_ptr.hbm [resolvable:$true] %s2038
          %2044 = dma.vmem_to_hbm [thread:$0]  %s2037, 1024, %s2039, %s2024, 256, 256, 16
        $region52: #{tpu_custom_call.1} parent=39 // pred_fallthru
          _
      $region40: #{tpu_custom_call.1} parent=5 // pred_fallthru
        _
      %p2045 = scmp.le.s32.totalorder 2, %s18
      // Predicated region
      $region53: #{tpu_custom_call.1} parent=5 // pred_check
        %p2046 = pneg %p2045
      $region54: #{tpu_custom_call.1} parent=5 // pred_check_branch
        %2048 = sbr.rel (%p2046) target = $region56
      $region55: #{tpu_custom_call.1} parent=5 // pred_region
        %s2049 = ssub.s32 %s18, 2
        // Predicated region
        $region57: #{tpu_custom_call.1} parent=55 // pred_check
          %p2050 = pneg %p157
        $region58: #{tpu_custom_call.1} parent=55 // pred_check_branch
          %2052 = sbr.rel (%p2050) target = $region60
        $region59: #{tpu_custom_call.1} parent=55 // pred_region
          %s2053 = sand.u32 %s142, 1
          %s2054 = scalar_lea.sflag [#allocation4], %s2053
          %s2055 = sand.u32 %s142, 1
          %s2056 = smul.addr %s2055, 64
          %s2057 = scalar_lea.vmem [#allocation7], %s2056
          %2059 = dma.done %s2054, 1024
        $region60: #{tpu_custom_call.1} parent=55 // pred_fallthru
          _
      $region56: #{tpu_custom_call.1} parent=5 // pred_fallthru
        _
    $region6: #{tpu_custom_call.1} parent=1 // loop_footer
      %s22 = sadd.s32 1, %s18
    $region7: #{tpu_custom_call.1} parent=1 // loop_footer_branch
      %17 = sbr.rel target = $region3
    $region8: #{tpu_custom_call.1} parent=1 // loop_exit
      _
    %2060 = vsyncpa [#allocation3], 1
    %s2061 = scalar_lea.sflag [#allocation3], 1
    %2062 = vsyncpa %s2061, 1
    %2063 = vsyncpa [#allocation6], 1
    %2064 = vsyncpa [#allocation4], 1
    %s2065 = scalar_lea.sflag [#allocation4], 1
    %2066 = vsyncpa %s2065, 1

</llo_original>
